<compile_context>
chip_gen: v7x
topology: tpu7x:2x2x1
jax: 0.10.0
libtpu: 0.0.40
codegen_flags: <defaults>
</compile_context>

<pallas_src>
import functools

import numpy as np
import jax
import jax.numpy as jnp
from jax.experimental import pallas as pl
from jax.experimental.pallas import tpu as pltpu


def _residual_stack_kernel(x_ref, w1_ref, b1_ref, a1_ref, wdw_ref,
                           b2_ref, a2_ref, w3_ref, b3_ref, o_ref, acc_ref,
                           *, num_block, H, W, Cm):
    """All Depth_Wise(residual=True) blocks for one row tile (whole images).

    x_ref / o_ref : (tile_rows, W*C)   lane-dense activation slab (aliased)
    w1_ref        : (B, W*C,  W*Cm)    block-diag 1x1 conv weights (BN1 folded)
    w3_ref        : (B, W*Cm, W*C)     block-diag projection weights (BN3 folded)
    wdw_ref       : (B, 9, 1, W*Cm)    depthwise taps (BN2 scale + W-edge mask folded)
    b*/a*_ref     : (B, 1, W*Cm|W*C)   biases / PReLU alphas tiled over W
    acc_ref       : (tile_rows, W*Cm)  VMEM scratch accumulator (depthwise 3x3)
    """
    rows = x_ref.shape[0]
    WCm = W * Cm

    # Row-validity masks for the +-1 shifts along H (computed once, reused by
    # every block).  The tile contains whole images, so these masks also kill
    # roll wrap-around across image boundaries within the tile.
    row = jax.lax.broadcasted_iota(jnp.int32, (rows, 1), 0) % H
    not_top = row != 0          # row r-1 exists inside the same image
    not_bot = row != H - 1      # row r+1 exists inside the same image

    x2d = x_ref[...]            # (rows, W*C); stays resident across blocks

    for blk in range(num_block):                       # static -> unrolled
        # ---- Conv_block #1: 1x1 conv (+folded BN1) + PReLU -----------------
        h = jnp.dot(x2d, w1_ref[blk], preferred_element_type=jnp.float32)
        h = h + b1_ref[blk]
        h = jnp.where(h > 0, h, a1_ref[blk] * h)        # (rows, W*Cm)

        # ---- Conv_block #2: depthwise 3x3, stride 1, pad 1 (+BN2, PReLU) ---
        # One kh-row at a time (bounds live ranges); H-shifts via XLU sublane
        # rolls + per-row masks, W-shifts via lane rolls with the edge mask
        # folded into the taps.  Accumulate into the VMEM scratch.
        for kh in range(3):
            if kh == 0:
                hk = jnp.where(not_top, pltpu.roll(h, 1, axis=0), 0.0)          # h[r-1]
            elif kh == 1:
                hk = h
            else:
                hk = jnp.where(not_bot, pltpu.roll(h, rows - 1, axis=0), 0.0)   # h[r+1]
            part = hk * wdw_ref[blk, kh * 3 + 1]
            part = part + pltpu.roll(hk, Cm, axis=1) * wdw_ref[blk, kh * 3 + 0]       # w-1
            part = part + pltpu.roll(hk, WCm - Cm, axis=1) * wdw_ref[blk, kh * 3 + 2] # w+1
            if kh == 0:
                acc_ref[...] = part
            else:
                acc_ref[...] = acc_ref[...] + part
        h2 = acc_ref[...] + b2_ref[blk]
        h2 = jnp.where(h2 > 0, h2, a2_ref[blk] * h2)

        # ---- Linear_block: 1x1 projection (+folded BN3) + residual add -----
        y = jnp.dot(h2, w3_ref[blk], preferred_element_type=jnp.float32)
        x2d = x2d + y + b3_ref[blk]

    o_ref[...] = x2d.astype(o_ref.dtype)


def pack_residual_params(blocks_params, W):
    """Fold BN scales into weights and re-layout everything lane-dense.

    Called ONCE at model init (hoisted out of the forward path).
    """
    W1b, B1, A1, TAP, B2, A2, W3b, B3 = ([] for _ in range(8))
    for (w1, s1, b1, a1, wdw, s2, b2, a2, w3, s3, b3) in blocks_params:
        C, Cm = w1.shape
        eye_w = jnp.eye(W, dtype=w1.dtype)
        W1b.append(jnp.kron(eye_w, w1 * s1))            # (W*C, W*Cm)
        W3b.append(jnp.kron(eye_w, w3 * s3))            # (W*Cm, W*C)
        B1.append(jnp.tile(b1, (1, W)))                 # (1, W*Cm)
        A1.append(jnp.tile(a1, (1, W)))
        B2.append(jnp.tile(b2, (1, W)))
        A2.append(jnp.tile(a2, (1, W)))
        B3.append(jnp.tile(b3, (1, W)))                 # (1, W*C)
        # Depthwise taps: fold BN2 scale and the zero-padding edge mask in W.
        wdwf = wdw * s2[0]                              # (3, 3, Cm)
        wmask = jnp.ones((3, W), w1.dtype)
        wmask = wmask.at[0, 0].set(0.0)                 # kw=0 reads w-1: invalid at w=0
        wmask = wmask.at[2, W - 1].set(0.0)             # kw=2 reads w+1: invalid at w=W-1
        tap = wmask[None, :, :, None] * wdwf[:, :, None, :]   # (3,3,W,Cm)
        TAP.append(tap.reshape(9, 1, W * Cm))
    st = lambda xs: jnp.stack(xs, axis=0)
    return st(W1b), st(B1), st(A1), st(TAP), st(B2), st(A2), st(W3b), st(B3)


def residual_forward(x, packed, *, num_block, Cm, images_per_tile=None):
    """Residual.forward for NHWC `x` with pre-packed weights: one pallas_call."""
    N, H, W, C = x.shape
    WC, WCm = W * C, W * Cm
    # Layout assumptions — fail loudly rather than silently mis-indexing.
    assert WC % 128 == 0 and WCm % 128 == 0, \
        "lane-dense layout needs W*C and W*Cm to be multiples of 128"
    assert packed[0].shape == (num_block, WC, WCm) and \
           packed[6].shape == (num_block, WCm, WC)

    # Row tile = whole images; target ~256 rows to fill the MXU M dimension
    # (v6e/v7x 256x256) when the real batch allows.
    if images_per_tile is None:
        images_per_tile = max(1, min(N, max(1, 256 // H)))
        while N % images_per_tile:
            images_per_tile -= 1
    assert N % images_per_tile == 0
    tile_rows = images_per_tile * H
    assert tile_rows % 8 == 0, "row tile must be a multiple of 8 sublanes"
    grid = (N // images_per_tile,)

    x2d = x.reshape(N * H, WC)          # lane-dense: last dim = W*C

    kernel = functools.partial(_residual_stack_kernel,
                               num_block=num_block, H=H, W=W, Cm=Cm)

    # Packed weights: full-array blocks with constant index_map -> resident in
    # VMEM across all grid steps (no re-fetch).
    def const_spec(arr):
        nd = arr.ndim
        return pl.BlockSpec(arr.shape, lambda i, _nd=nd: (0,) * _nd)

    act_spec = pl.BlockSpec((tile_rows, WC), lambda i: (i, 0))

    out2d = pl.pallas_call(
        kernel,
        out_shape=jax.ShapeDtypeStruct((N * H, WC), x.dtype),
        grid=grid,
        in_specs=[act_spec] + [const_spec(a) for a in packed],
        out_specs=act_spec,
        scratch_shapes=[pltpu.VMEM((tile_rows, WCm), jnp.float32)],
        # Activation slab is fully consumed -> write result in place (P8).
        input_output_aliases={0: 0},
        compiler_params=pltpu.CompilerParams(
            dimension_semantics=("parallel",),
            # NOTE: at production sizes, set vmem_limit_bytes explicitly so the
            # resident weights + double-buffered tiles + scratch fit the
            # per-generation scoped VMEM (v5e default 16 MiB, v7x physical 64 MiB).
        ),
    )(x2d, *packed)
    return out2d.reshape(N, H, W, C)


# ------------------------- parameter initialization -------------------------

def _fold_bn(gamma, beta, mean, var, eps=1e-5):
    scale = gamma / jnp.sqrt(var + eps)
    bias = beta - mean * scale
    return scale.reshape(1, -1), bias.reshape(1, -1)


def init_block_params(key, c_in, c_mid, c_out):
    k = jax.random.split(key, 16)

    def bn(i0, c):
        gamma = 1.0 + 0.1 * jax.random.normal(k[i0], (c,), jnp.float32)
        beta = 0.1 * jax.random.normal(k[i0 + 1], (c,), jnp.float32)
        mean = 0.1 * jax.random.normal(k[i0 + 2], (c,), jnp.float32)
        var = 1.0 + 0.1 * jax.random.uniform(k[i0 + 3], (c,), jnp.float32)
        return _fold_bn(gamma, beta, mean, var)

    # 1x1 conv: PyTorch weight (c_mid, c_in, 1, 1) -> (c_in, c_mid)
    w1 = jax.random.normal(k[0], (c_in, c_mid), jnp.float32) / np.sqrt(c_in)
    s1, b1 = bn(1, c_mid)
    a1 = jnp.full((1, c_mid), 0.25, jnp.float32)          # PReLU default init
    # depthwise 3x3 conv: PyTorch weight (c_mid, 1, 3, 3) -> (3, 3, c_mid)
    wdw = jax.random.normal(k[5], (3, 3, c_mid), jnp.float32) / 3.0
    s2, b2 = bn(6, c_mid)
    a2 = jnp.full((1, c_mid), 0.25, jnp.float32)
    # projection 1x1 conv: (c_out, c_mid, 1, 1) -> (c_mid, c_out)
    w3 = jax.random.normal(k[10], (c_mid, c_out), jnp.float32) / np.sqrt(c_mid)
    s3, b3 = bn(11, c_out)
    return (w1, s1, b1, a1, wdw, s2, b2, a2, w3, s3, b3)


# --------------------------- pure-JAX reference -----------------------------

def _ref_block(x, params):
    w1, s1, b1, a1, wdw, s2, b2, a2, w3, s3, b3 = params
    H, W = x.shape[1], x.shape[2]
    hi = jax.lax.Precision.HIGHEST
    h = jnp.einsum('nhwc,cd->nhwd', x, w1, precision=hi)
    h = h * s1[0] + b1[0]
    h = jnp.where(h > 0, h, a1[0] * h)
    hp = jnp.pad(h, ((0, 0), (1, 1), (1, 1), (0, 0)))
    acc = sum(hp[:, kh:kh + H, kw:kw + W, :] * wdw[kh, kw]
              for kh in range(3) for kw in range(3))
    h2 = acc * s2[0] + b2[0]
    h2 = jnp.where(h2 > 0, h2, a2[0] * h2)
    h3 = jnp.einsum('nhwc,cd->nhwd', h2, w3, precision=hi)
    h3 = h3 * s3[0] + b3[0]
    return x + h3


if __name__ == "__main__":
    key = jax.random.PRNGKey(0)
    N, C, H, W = 2, 8, 16, 16          # PyTorch NCHW input shape (2, 8, 16, 16)
    Cm = 16                            # expansion channels inside each block
    num_block = 2

    kx, kp = jax.random.split(key)
    x_nchw = jax.random.normal(kx, (N, C, H, W), jnp.float32)   # PyTorch layout
    x = jnp.transpose(x_nchw, (0, 2, 3, 1))                     # -> NHWC

    block_keys = jax.random.split(kp, num_block)
    blocks = [init_block_params(bk, C, Cm, C) for bk in block_keys]

    # Weight packing done ONCE at init (hoisted out of the forward path).
    packed = jax.block_until_ready(pack_residual_params(blocks, W))

    out = jax.block_until_ready(
        residual_forward(x, packed, num_block=num_block, Cm=Cm))

    ref = x
    for p in blocks:
        ref = _ref_block(ref, p)
    assert out.shape == (N, H, W, C)
    assert jnp.allclose(out, ref, atol=2e-4, rtol=2e-4), "mismatch vs reference"

    print("KERNEL_OK")
</pallas_src>

<mosaic_0001>
module attributes {stable_mosaic.version = 11 : i64} {
  func.func @_residual_stack_kernel(%arg0: i32, %arg1: memref<32x128xf32, #tpu.memory_space<vmem>>, %arg2: memref<2x128x256xf32, #tpu.memory_space<vmem>>, %arg3: memref<2x1x256xf32, #tpu.memory_space<vmem>>, %arg4: memref<2x1x256xf32, #tpu.memory_space<vmem>>, %arg5: memref<2x9x1x256xf32, #tpu.memory_space<vmem>>, %arg6: memref<2x1x256xf32, #tpu.memory_space<vmem>>, %arg7: memref<2x1x256xf32, #tpu.memory_space<vmem>>, %arg8: memref<2x256x128xf32, #tpu.memory_space<vmem>>, %arg9: memref<2x1x128xf32, #tpu.memory_space<vmem>>, %arg10: memref<32x128xf32, #tpu.memory_space<vmem>>, %arg11: memref<32x256xf32, #tpu.memory_space<vmem>>) attributes {dimension_semantics = [#tpu.dimension_semantics<parallel>], iteration_bounds = array<i64: 1>, scalar_prefetch = 0 : i64, scratch_operands = 1 : i64, tpu.core_type = #tpu.core_type<tc>, window_params = [{transform_indices = @transform_0, window_bounds = array<i64: 32, 128>}, {pipeline_mode = #tpu.pipeline_mode<synchronous>, transform_indices = @transform_1, window_bounds = array<i64: 2, 128, 256>}, {pipeline_mode = #tpu.pipeline_mode<synchronous>, transform_indices = @transform_2, window_bounds = array<i64: 2, 1, 256>}, {pipeline_mode = #tpu.pipeline_mode<synchronous>, transform_indices = @transform_3, window_bounds = array<i64: 2, 1, 256>}, {pipeline_mode = #tpu.pipeline_mode<synchronous>, transform_indices = @transform_4, window_bounds = array<i64: 2, 9, 1, 256>}, {pipeline_mode = #tpu.pipeline_mode<synchronous>, transform_indices = @transform_5, window_bounds = array<i64: 2, 1, 256>}, {pipeline_mode = #tpu.pipeline_mode<synchronous>, transform_indices = @transform_6, window_bounds = array<i64: 2, 1, 256>}, {pipeline_mode = #tpu.pipeline_mode<synchronous>, transform_indices = @transform_7, window_bounds = array<i64: 2, 256, 128>}, {pipeline_mode = #tpu.pipeline_mode<synchronous>, transform_indices = @transform_8, window_bounds = array<i64: 2, 1, 128>}, {transform_indices = @transform_9, window_bounds = array<i64: 32, 128>}]} {
    %0 = tpu.iota {dimensions = array<i32: 0>} : vector<32x1xi32>
    %c16_i32 = arith.constant 16 : i32
    %c0_i32 = arith.constant 0 : i32
    %1 = arith.cmpi eq, %c16_i32, %c0_i32 : i32
    %c1_i32 = arith.constant 1 : i32
    %2 = arith.select %1, %c1_i32, %c16_i32 : i32
    %3 = vector.broadcast %2 : i32 to vector<32x1xi32>
    %4 = arith.remsi %0, %3 : vector<32x1xi32>
    %c0_i32_0 = arith.constant 0 : i32
    %5 = vector.broadcast %c0_i32_0 : i32 to vector<32x1xi32>
    %6 = arith.cmpi ne, %4, %5 : vector<32x1xi32>
    %c0_i32_1 = arith.constant 0 : i32
    %7 = vector.broadcast %c0_i32_1 : i32 to vector<32x1xi32>
    %8 = arith.cmpi slt, %4, %7 : vector<32x1xi32>
    %c0_i32_2 = arith.constant 0 : i32
    %9 = arith.cmpi slt, %2, %c0_i32_2 : i32
    %10 = vector.broadcast %9 : i1 to vector<32x1xi1>
    %11 = vector.broadcast %10 : vector<32x1xi1> to vector<32x1xi1>
    %12 = arith.xori %8, %11 : vector<32x1xi1>
    %13 = arith.andi %12, %6 : vector<32x1xi1>
    %14 = vector.broadcast %2 : i32 to vector<32x1xi32>
    %15 = arith.addi %4, %14 : vector<32x1xi32>
    %16 = arith.select %13, %15, %4 : vector<32x1xi1>, vector<32x1xi32>
    %c0_i32_3 = arith.constant 0 : i32
    %17 = vector.broadcast %c0_i32_3 : i32 to vector<32x1xi32>
    %18 = arith.cmpi ne, %16, %17 : vector<32x1xi32>
    %c15_i32 = arith.constant 15 : i32
    %19 = vector.broadcast %c15_i32 : i32 to vector<32x1xi32>
    %20 = arith.cmpi ne, %16, %19 : vector<32x1xi32>
    %c0 = arith.constant 0 : index
    %c0_4 = arith.constant 0 : index
    %21 = vector.load %arg1[%c0, %c0_4] : memref<32x128xf32, #tpu.memory_space<vmem>>, vector<32x128xf32>
    %c0_5 = arith.constant 0 : index
    %c0_6 = arith.constant 0 : index
    %c0_7 = arith.constant 0 : index
    %22 = vector.load %arg2[%c0_5, %c0_6, %c0_7] : memref<2x128x256xf32, #tpu.memory_space<vmem>>, vector<1x128x256xf32>
    %23 = vector.shape_cast %22 : vector<1x128x256xf32> to vector<128x256xf32>
    %cst = arith.constant dense<0.000000e+00> : vector<32x256xf32>
    %24 = tpu.matmul %21, %23, %cst {dimension_numbers = #tpu.dot_dimension_numbers<[1], [0], [0], [1], [0, 0, 1, 1], [], []>} : vector<32x128xf32>, vector<128x256xf32>, vector<32x256xf32> -> vector<32x256xf32>
    %c0_8 = arith.constant 0 : index
    %c0_9 = arith.constant 0 : index
    %c0_10 = arith.constant 0 : index
    %25 = vector.load %arg3[%c0_8, %c0_9, %c0_10] : memref<2x1x256xf32, #tpu.memory_space<vmem>>, vector<1x1x256xf32>
    %26 = vector.shape_cast %25 : vector<1x1x256xf32> to vector<1x256xf32>
    %27 = vector.broadcast %26 : vector<1x256xf32> to vector<32x256xf32>
    %28 = arith.addf %24, %27 : vector<32x256xf32>
    %cst_11 = arith.constant 0.000000e+00 : f32
    %29 = vector.broadcast %cst_11 : f32 to vector<32x256xf32>
    %30 = arith.cmpf ogt, %28, %29 : vector<32x256xf32>
    %c0_12 = arith.constant 0 : index
    %c0_13 = arith.constant 0 : index
    %c0_14 = arith.constant 0 : index
    %31 = vector.load %arg4[%c0_12, %c0_13, %c0_14] : memref<2x1x256xf32, #tpu.memory_space<vmem>>, vector<1x1x256xf32>
    %32 = vector.shape_cast %31 : vector<1x1x256xf32> to vector<1x256xf32>
    %33 = vector.broadcast %32 : vector<1x256xf32> to vector<32x256xf32>
    %34 = arith.mulf %33, %28 : vector<32x256xf32>
    %35 = arith.select %30, %28, %34 : vector<32x256xi1>, vector<32x256xf32>
    %c1_i32_15 = arith.constant 1 : i32
    %36 = tpu.dynamic_rotate %35 by %c1_i32_15 dim 0 : vector<32x256xf32>, i32 -> vector<32x256xf32>
    %cst_16 = arith.constant 0.000000e+00 : f32
    %37 = vector.shape_cast %18 : vector<32x1xi1> to vector<32x1xi1>
    %38 = vector.broadcast %37 : vector<32x1xi1> to vector<32x256xi1>
    %39 = vector.broadcast %cst_16 : f32 to vector<32x256xf32>
    %40 = arith.select %38, %36, %39 : vector<32x256xi1>, vector<32x256xf32>
    %c0_17 = arith.constant 0 : index
    %c1 = arith.constant 1 : index
    %c0_18 = arith.constant 0 : index
    %c0_19 = arith.constant 0 : index
    %41 = vector.load %arg5[%c0_17, %c1, %c0_18, %c0_19] : memref<2x9x1x256xf32, #tpu.memory_space<vmem>>, vector<1x1x1x256xf32>
    %42 = vector.shape_cast %41 : vector<1x1x1x256xf32> to vector<1x256xf32>
    %43 = vector.broadcast %42 : vector<1x256xf32> to vector<32x256xf32>
    %44 = arith.mulf %40, %43 : vector<32x256xf32>
    %c16_i32_20 = arith.constant 16 : i32
    %45 = tpu.dynamic_rotate %40 by %c16_i32_20 dim 1 : vector<32x256xf32>, i32 -> vector<32x256xf32>
    %c0_21 = arith.constant 0 : index
    %c0_22 = arith.constant 0 : index
    %c0_23 = arith.constant 0 : index
    %c0_24 = arith.constant 0 : index
    %46 = vector.load %arg5[%c0_21, %c0_22, %c0_23, %c0_24] : memref<2x9x1x256xf32, #tpu.memory_space<vmem>>, vector<1x1x1x256xf32>
    %47 = vector.shape_cast %46 : vector<1x1x1x256xf32> to vector<1x256xf32>
    %48 = vector.broadcast %47 : vector<1x256xf32> to vector<32x256xf32>
    %49 = arith.mulf %45, %48 : vector<32x256xf32>
    %50 = arith.addf %44, %49 : vector<32x256xf32>
    %c240_i32 = arith.constant 240 : i32
    %51 = tpu.dynamic_rotate %40 by %c240_i32 dim 1 : vector<32x256xf32>, i32 -> vector<32x256xf32>
    %c0_25 = arith.constant 0 : index
    %c2 = arith.constant 2 : index
    %c0_26 = arith.constant 0 : index
    %c0_27 = arith.constant 0 : index
    %52 = vector.load %arg5[%c0_25, %c2, %c0_26, %c0_27] : memref<2x9x1x256xf32, #tpu.memory_space<vmem>>, vector<1x1x1x256xf32>
    %53 = vector.shape_cast %52 : vector<1x1x1x256xf32> to vector<1x256xf32>
    %54 = vector.broadcast %53 : vector<1x256xf32> to vector<32x256xf32>
    %55 = arith.mulf %51, %54 : vector<32x256xf32>
    %56 = arith.addf %50, %55 : vector<32x256xf32>
    %c0_28 = arith.constant 0 : index
    %c0_29 = arith.constant 0 : index
    %57 = vector.load %arg11[%c0_28, %c0_29] : memref<32x256xf32, #tpu.memory_space<vmem>>, vector<32x256xf32>
    tpu.vector_store %arg11[%c0_28, %c0_29], %56 {strides = array<i32>} : memref<32x256xf32, #tpu.memory_space<vmem>>, vector<32x256xf32>,
    %c0_30 = arith.constant 0 : index
    %c4 = arith.constant 4 : index
    %c0_31 = arith.constant 0 : index
    %c0_32 = arith.constant 0 : index
    %58 = vector.load %arg5[%c0_30, %c4, %c0_31, %c0_32] : memref<2x9x1x256xf32, #tpu.memory_space<vmem>>, vector<1x1x1x256xf32>
    %59 = vector.shape_cast %58 : vector<1x1x1x256xf32> to vector<1x256xf32>
    %60 = vector.broadcast %59 : vector<1x256xf32> to vector<32x256xf32>
    %61 = arith.mulf %35, %60 : vector<32x256xf32>
    %c16_i32_33 = arith.constant 16 : i32
    %62 = tpu.dynamic_rotate %35 by %c16_i32_33 dim 1 : vector<32x256xf32>, i32 -> vector<32x256xf32>
    %c0_34 = arith.constant 0 : index
    %c3 = arith.constant 3 : index
    %c0_35 = arith.constant 0 : index
    %c0_36 = arith.constant 0 : index
    %63 = vector.load %arg5[%c0_34, %c3, %c0_35, %c0_36] : memref<2x9x1x256xf32, #tpu.memory_space<vmem>>, vector<1x1x1x256xf32>
    %64 = vector.shape_cast %63 : vector<1x1x1x256xf32> to vector<1x256xf32>
    %65 = vector.broadcast %64 : vector<1x256xf32> to vector<32x256xf32>
    %66 = arith.mulf %62, %65 : vector<32x256xf32>
    %67 = arith.addf %61, %66 : vector<32x256xf32>
    %c240_i32_37 = arith.constant 240 : i32
    %68 = tpu.dynamic_rotate %35 by %c240_i32_37 dim 1 : vector<32x256xf32>, i32 -> vector<32x256xf32>
    %c0_38 = arith.constant 0 : index
    %c5 = arith.constant 5 : index
    %c0_39 = arith.constant 0 : index
    %c0_40 = arith.constant 0 : index
    %69 = vector.load %arg5[%c0_38, %c5, %c0_39, %c0_40] : memref<2x9x1x256xf32, #tpu.memory_space<vmem>>, vector<1x1x1x256xf32>
    %70 = vector.shape_cast %69 : vector<1x1x1x256xf32> to vector<1x256xf32>
    %71 = vector.broadcast %70 : vector<1x256xf32> to vector<32x256xf32>
    %72 = arith.mulf %68, %71 : vector<32x256xf32>
    %73 = arith.addf %67, %72 : vector<32x256xf32>
    %c0_41 = arith.constant 0 : index
    %c0_42 = arith.constant 0 : index
    %74 = vector.load %arg11[%c0_41, %c0_42] : memref<32x256xf32, #tpu.memory_space<vmem>>, vector<32x256xf32>
    %75 = arith.addf %74, %73 : vector<32x256xf32>
    %c0_43 = arith.constant 0 : index
    %c0_44 = arith.constant 0 : index
    %76 = vector.load %arg11[%c0_43, %c0_44] : memref<32x256xf32, #tpu.memory_space<vmem>>, vector<32x256xf32>
    tpu.vector_store %arg11[%c0_43, %c0_44], %75 {strides = array<i32>} : memref<32x256xf32, #tpu.memory_space<vmem>>, vector<32x256xf32>,
    %c31_i32 = arith.constant 31 : i32
    %77 = tpu.dynamic_rotate %35 by %c31_i32 dim 0 : vector<32x256xf32>, i32 -> vector<32x256xf32>
    %cst_45 = arith.constant 0.000000e+00 : f32
    %78 = vector.shape_cast %20 : vector<32x1xi1> to vector<32x1xi1>
    %79 = vector.broadcast %78 : vector<32x1xi1> to vector<32x256xi1>
    %80 = vector.broadcast %cst_45 : f32 to vector<32x256xf32>
    %81 = arith.select %79, %77, %80 : vector<32x256xi1>, vector<32x256xf32>
    %c0_46 = arith.constant 0 : index
    %c7 = arith.constant 7 : index
    %c0_47 = arith.constant 0 : index
    %c0_48 = arith.constant 0 : index
    %82 = vector.load %arg5[%c0_46, %c7, %c0_47, %c0_48] : memref<2x9x1x256xf32, #tpu.memory_space<vmem>>, vector<1x1x1x256xf32>
    %83 = vector.shape_cast %82 : vector<1x1x1x256xf32> to vector<1x256xf32>
    %84 = vector.broadcast %83 : vector<1x256xf32> to vector<32x256xf32>
    %85 = arith.mulf %81, %84 : vector<32x256xf32>
    %c16_i32_49 = arith.constant 16 : i32
    %86 = tpu.dynamic_rotate %81 by %c16_i32_49 dim 1 : vector<32x256xf32>, i32 -> vector<32x256xf32>
    %c0_50 = arith.constant 0 : index
    %c6 = arith.constant 6 : index
    %c0_51 = arith.constant 0 : index
    %c0_52 = arith.constant 0 : index
    %87 = vector.load %arg5[%c0_50, %c6, %c0_51, %c0_52] : memref<2x9x1x256xf32, #tpu.memory_space<vmem>>, vector<1x1x1x256xf32>
    %88 = vector.shape_cast %87 : vector<1x1x1x256xf32> to vector<1x256xf32>
    %89 = vector.broadcast %88 : vector<1x256xf32> to vector<32x256xf32>
    %90 = arith.mulf %86, %89 : vector<32x256xf32>
    %91 = arith.addf %85, %90 : vector<32x256xf32>
    %c240_i32_53 = arith.constant 240 : i32
    %92 = tpu.dynamic_rotate %81 by %c240_i32_53 dim 1 : vector<32x256xf32>, i32 -> vector<32x256xf32>
    %c0_54 = arith.constant 0 : index
    %c8 = arith.constant 8 : index
    %c0_55 = arith.constant 0 : index
    %c0_56 = arith.constant 0 : index
    %93 = vector.load %arg5[%c0_54, %c8, %c0_55, %c0_56] : memref<2x9x1x256xf32, #tpu.memory_space<vmem>>, vector<1x1x1x256xf32>
    %94 = vector.shape_cast %93 : vector<1x1x1x256xf32> to vector<1x256xf32>
    %95 = vector.broadcast %94 : vector<1x256xf32> to vector<32x256xf32>
    %96 = arith.mulf %92, %95 : vector<32x256xf32>
    %97 = arith.addf %91, %96 : vector<32x256xf32>
    %c0_57 = arith.constant 0 : index
    %c0_58 = arith.constant 0 : index
    %98 = vector.load %arg11[%c0_57, %c0_58] : memref<32x256xf32, #tpu.memory_space<vmem>>, vector<32x256xf32>
    %99 = arith.addf %98, %97 : vector<32x256xf32>
    %c0_59 = arith.constant 0 : index
    %c0_60 = arith.constant 0 : index
    %100 = vector.load %arg11[%c0_59, %c0_60] : memref<32x256xf32, #tpu.memory_space<vmem>>, vector<32x256xf32>
    tpu.vector_store %arg11[%c0_59, %c0_60], %99 {strides = array<i32>} : memref<32x256xf32, #tpu.memory_space<vmem>>, vector<32x256xf32>,
    %c0_61 = arith.constant 0 : index
    %c0_62 = arith.constant 0 : index
    %101 = vector.load %arg11[%c0_61, %c0_62] : memref<32x256xf32, #tpu.memory_space<vmem>>, vector<32x256xf32>
    %c0_63 = arith.constant 0 : index
    %c0_64 = arith.constant 0 : index
    %c0_65 = arith.constant 0 : index
    %102 = vector.load %arg6[%c0_63, %c0_64, %c0_65] : memref<2x1x256xf32, #tpu.memory_space<vmem>>, vector<1x1x256xf32>
    %103 = vector.shape_cast %102 : vector<1x1x256xf32> to vector<1x256xf32>
    %104 = vector.broadcast %103 : vector<1x256xf32> to vector<32x256xf32>
    %105 = arith.addf %101, %104 : vector<32x256xf32>
    %cst_66 = arith.constant 0.000000e+00 : f32
    %106 = vector.broadcast %cst_66 : f32 to vector<32x256xf32>
    %107 = arith.cmpf ogt, %105, %106 : vector<32x256xf32>
    %c0_67 = arith.constant 0 : index
    %c0_68 = arith.constant 0 : index
    %c0_69 = arith.constant 0 : index
    %108 = vector.load %arg7[%c0_67, %c0_68, %c0_69] : memref<2x1x256xf32, #tpu.memory_space<vmem>>, vector<1x1x256xf32>
    %109 = vector.shape_cast %108 : vector<1x1x256xf32> to vector<1x256xf32>
    %110 = vector.broadcast %109 : vector<1x256xf32> to vector<32x256xf32>
    %111 = arith.mulf %110, %105 : vector<32x256xf32>
    %112 = arith.select %107, %105, %111 : vector<32x256xi1>, vector<32x256xf32>
    %c0_70 = arith.constant 0 : index
    %c0_71 = arith.constant 0 : index
    %c0_72 = arith.constant 0 : index
    %113 = vector.load %arg8[%c0_70, %c0_71, %c0_72] : memref<2x256x128xf32, #tpu.memory_space<vmem>>, vector<1x256x128xf32>
    %114 = vector.shape_cast %113 : vector<1x256x128xf32> to vector<256x128xf32>
    %cst_73 = arith.constant dense<0.000000e+00> : vector<32x128xf32>
    %115 = tpu.matmul %112, %114, %cst_73 {dimension_numbers = #tpu.dot_dimension_numbers<[1], [0], [0], [1], [0, 0, 1, 1], [], []>} : vector<32x256xf32>, vector<256x128xf32>, vector<32x128xf32> -> vector<32x128xf32>
    %116 = arith.addf %21, %115 : vector<32x128xf32>
    %c0_74 = arith.constant 0 : index
    %c0_75 = arith.constant 0 : index
    %c0_76 = arith.constant 0 : index
    %117 = vector.load %arg9[%c0_74, %c0_75, %c0_76] : memref<2x1x128xf32, #tpu.memory_space<vmem>>, vector<1x1x128xf32>
    %118 = vector.shape_cast %117 : vector<1x1x128xf32> to vector<1x128xf32>
    %119 = vector.broadcast %118 : vector<1x128xf32> to vector<32x128xf32>
    %120 = arith.addf %116, %119 : vector<32x128xf32>
    %c1_77 = arith.constant 1 : index
    %c0_78 = arith.constant 0 : index
    %c0_79 = arith.constant 0 : index
    %121 = vector.load %arg2[%c1_77, %c0_78, %c0_79] : memref<2x128x256xf32, #tpu.memory_space<vmem>>, vector<1x128x256xf32>
    %122 = vector.shape_cast %121 : vector<1x128x256xf32> to vector<128x256xf32>
    %cst_80 = arith.constant dense<0.000000e+00> : vector<32x256xf32>
    %123 = tpu.matmul %120, %122, %cst_80 {dimension_numbers = #tpu.dot_dimension_numbers<[1], [0], [0], [1], [0, 0, 1, 1], [], []>} : vector<32x128xf32>, vector<128x256xf32>, vector<32x256xf32> -> vector<32x256xf32>
    %c1_81 = arith.constant 1 : index
    %c0_82 = arith.constant 0 : index
    %c0_83 = arith.constant 0 : index
    %124 = vector.load %arg3[%c1_81, %c0_82, %c0_83] : memref<2x1x256xf32, #tpu.memory_space<vmem>>, vector<1x1x256xf32>
    %125 = vector.shape_cast %124 : vector<1x1x256xf32> to vector<1x256xf32>
    %126 = vector.broadcast %125 : vector<1x256xf32> to vector<32x256xf32>
    %127 = arith.addf %123, %126 : vector<32x256xf32>
    %cst_84 = arith.constant 0.000000e+00 : f32
    %128 = vector.broadcast %cst_84 : f32 to vector<32x256xf32>
    %129 = arith.cmpf ogt, %127, %128 : vector<32x256xf32>
    %c1_85 = arith.constant 1 : index
    %c0_86 = arith.constant 0 : index
    %c0_87 = arith.constant 0 : index
    %130 = vector.load %arg4[%c1_85, %c0_86, %c0_87] : memref<2x1x256xf32, #tpu.memory_space<vmem>>, vector<1x1x256xf32>
    %131 = vector.shape_cast %130 : vector<1x1x256xf32> to vector<1x256xf32>
    %132 = vector.broadcast %131 : vector<1x256xf32> to vector<32x256xf32>
    %133 = arith.mulf %132, %127 : vector<32x256xf32>
    %134 = arith.select %129, %127, %133 : vector<32x256xi1>, vector<32x256xf32>
    %c1_i32_88 = arith.constant 1 : i32
    %135 = tpu.dynamic_rotate %134 by %c1_i32_88 dim 0 : vector<32x256xf32>, i32 -> vector<32x256xf32>
    %cst_89 = arith.constant 0.000000e+00 : f32
    %136 = vector.shape_cast %18 : vector<32x1xi1> to vector<32x1xi1>
    %137 = vector.broadcast %136 : vector<32x1xi1> to vector<32x256xi1>
    %138 = vector.broadcast %cst_89 : f32 to vector<32x256xf32>
    %139 = arith.select %137, %135, %138 : vector<32x256xi1>, vector<32x256xf32>
    %c1_90 = arith.constant 1 : index
    %c1_91 = arith.constant 1 : index
    %c0_92 = arith.constant 0 : index
    %c0_93 = arith.constant 0 : index
    %140 = vector.load %arg5[%c1_90, %c1_91, %c0_92, %c0_93] : memref<2x9x1x256xf32, #tpu.memory_space<vmem>>, vector<1x1x1x256xf32>
    %141 = vector.shape_cast %140 : vector<1x1x1x256xf32> to vector<1x256xf32>
    %142 = vector.broadcast %141 : vector<1x256xf32> to vector<32x256xf32>
    %143 = arith.mulf %139, %142 : vector<32x256xf32>
    %c16_i32_94 = arith.constant 16 : i32
    %144 = tpu.dynamic_rotate %139 by %c16_i32_94 dim 1 : vector<32x256xf32>, i32 -> vector<32x256xf32>
    %c1_95 = arith.constant 1 : index
    %c0_96 = arith.constant 0 : index
    %c0_97 = arith.constant 0 : index
    %c0_98 = arith.constant 0 : index
    %145 = vector.load %arg5[%c1_95, %c0_96, %c0_97, %c0_98] : memref<2x9x1x256xf32, #tpu.memory_space<vmem>>, vector<1x1x1x256xf32>
    %146 = vector.shape_cast %145 : vector<1x1x1x256xf32> to vector<1x256xf32>
    %147 = vector.broadcast %146 : vector<1x256xf32> to vector<32x256xf32>
    %148 = arith.mulf %144, %147 : vector<32x256xf32>
    %149 = arith.addf %143, %148 : vector<32x256xf32>
    %c240_i32_99 = arith.constant 240 : i32
    %150 = tpu.dynamic_rotate %139 by %c240_i32_99 dim 1 : vector<32x256xf32>, i32 -> vector<32x256xf32>
    %c1_100 = arith.constant 1 : index
    %c2_101 = arith.constant 2 : index
    %c0_102 = arith.constant 0 : index
    %c0_103 = arith.constant 0 : index
    %151 = vector.load %arg5[%c1_100, %c2_101, %c0_102, %c0_103] : memref<2x9x1x256xf32, #tpu.memory_space<vmem>>, vector<1x1x1x256xf32>
    %152 = vector.shape_cast %151 : vector<1x1x1x256xf32> to vector<1x256xf32>
    %153 = vector.broadcast %152 : vector<1x256xf32> to vector<32x256xf32>
    %154 = arith.mulf %150, %153 : vector<32x256xf32>
    %155 = arith.addf %149, %154 : vector<32x256xf32>
    %c0_104 = arith.constant 0 : index
    %c0_105 = arith.constant 0 : index
    %156 = vector.load %arg11[%c0_104, %c0_105] : memref<32x256xf32, #tpu.memory_space<vmem>>, vector<32x256xf32>
    tpu.vector_store %arg11[%c0_104, %c0_105], %155 {strides = array<i32>} : memref<32x256xf32, #tpu.memory_space<vmem>>, vector<32x256xf32>,
    %c1_106 = arith.constant 1 : index
    %c4_107 = arith.constant 4 : index
    %c0_108 = arith.constant 0 : index
    %c0_109 = arith.constant 0 : index
    %157 = vector.load %arg5[%c1_106, %c4_107, %c0_108, %c0_109] : memref<2x9x1x256xf32, #tpu.memory_space<vmem>>, vector<1x1x1x256xf32>
    %158 = vector.shape_cast %157 : vector<1x1x1x256xf32> to vector<1x256xf32>
    %159 = vector.broadcast %158 : vector<1x256xf32> to vector<32x256xf32>
    %160 = arith.mulf %134, %159 : vector<32x256xf32>
    %c16_i32_110 = arith.constant 16 : i32
    %161 = tpu.dynamic_rotate %134 by %c16_i32_110 dim 1 : vector<32x256xf32>, i32 -> vector<32x256xf32>
    %c1_111 = arith.constant 1 : index
    %c3_112 = arith.constant 3 : index
    %c0_113 = arith.constant 0 : index
    %c0_114 = arith.constant 0 : index
    %162 = vector.load %arg5[%c1_111, %c3_112, %c0_113, %c0_114] : memref<2x9x1x256xf32, #tpu.memory_space<vmem>>, vector<1x1x1x256xf32>
    %163 = vector.shape_cast %162 : vector<1x1x1x256xf32> to vector<1x256xf32>
    %164 = vector.broadcast %163 : vector<1x256xf32> to vector<32x256xf32>
    %165 = arith.mulf %161, %164 : vector<32x256xf32>
    %166 = arith.addf %160, %165 : vector<32x256xf32>
    %c240_i32_115 = arith.constant 240 : i32
    %167 = tpu.dynamic_rotate %134 by %c240_i32_115 dim 1 : vector<32x256xf32>, i32 -> vector<32x256xf32>
    %c1_116 = arith.constant 1 : index
    %c5_117 = arith.constant 5 : index
    %c0_118 = arith.constant 0 : index
    %c0_119 = arith.constant 0 : index
    %168 = vector.load %arg5[%c1_116, %c5_117, %c0_118, %c0_119] : memref<2x9x1x256xf32, #tpu.memory_space<vmem>>, vector<1x1x1x256xf32>
    %169 = vector.shape_cast %168 : vector<1x1x1x256xf32> to vector<1x256xf32>
    %170 = vector.broadcast %169 : vector<1x256xf32> to vector<32x256xf32>
    %171 = arith.mulf %167, %170 : vector<32x256xf32>
    %172 = arith.addf %166, %171 : vector<32x256xf32>
    %c0_120 = arith.constant 0 : index
    %c0_121 = arith.constant 0 : index
    %173 = vector.load %arg11[%c0_120, %c0_121] : memref<32x256xf32, #tpu.memory_space<vmem>>, vector<32x256xf32>
    %174 = arith.addf %173, %172 : vector<32x256xf32>
    %c0_122 = arith.constant 0 : index
    %c0_123 = arith.constant 0 : index
    %175 = vector.load %arg11[%c0_122, %c0_123] : memref<32x256xf32, #tpu.memory_space<vmem>>, vector<32x256xf32>
    tpu.vector_store %arg11[%c0_122, %c0_123], %174 {strides = array<i32>} : memref<32x256xf32, #tpu.memory_space<vmem>>, vector<32x256xf32>,
    %c31_i32_124 = arith.constant 31 : i32
    %176 = tpu.dynamic_rotate %134 by %c31_i32_124 dim 0 : vector<32x256xf32>, i32 -> vector<32x256xf32>
    %cst_125 = arith.constant 0.000000e+00 : f32
    %177 = vector.shape_cast %20 : vector<32x1xi1> to vector<32x1xi1>
    %178 = vector.broadcast %177 : vector<32x1xi1> to vector<32x256xi1>
    %179 = vector.broadcast %cst_125 : f32 to vector<32x256xf32>
    %180 = arith.select %178, %176, %179 : vector<32x256xi1>, vector<32x256xf32>
    %c1_126 = arith.constant 1 : index
    %c7_127 = arith.constant 7 : index
    %c0_128 = arith.constant 0 : index
    %c0_129 = arith.constant 0 : index
    %181 = vector.load %arg5[%c1_126, %c7_127, %c0_128, %c0_129] : memref<2x9x1x256xf32, #tpu.memory_space<vmem>>, vector<1x1x1x256xf32>
    %182 = vector.shape_cast %181 : vector<1x1x1x256xf32> to vector<1x256xf32>
    %183 = vector.broadcast %182 : vector<1x256xf32> to vector<32x256xf32>
    %184 = arith.mulf %180, %183 : vector<32x256xf32>
    %c16_i32_130 = arith.constant 16 : i32
    %185 = tpu.dynamic_rotate %180 by %c16_i32_130 dim 1 : vector<32x256xf32>, i32 -> vector<32x256xf32>
    %c1_131 = arith.constant 1 : index
    %c6_132 = arith.constant 6 : index
    %c0_133 = arith.constant 0 : index
    %c0_134 = arith.constant 0 : index
    %186 = vector.load %arg5[%c1_131, %c6_132, %c0_133, %c0_134] : memref<2x9x1x256xf32, #tpu.memory_space<vmem>>, vector<1x1x1x256xf32>
    %187 = vector.shape_cast %186 : vector<1x1x1x256xf32> to vector<1x256xf32>
    %188 = vector.broadcast %187 : vector<1x256xf32> to vector<32x256xf32>
    %189 = arith.mulf %185, %188 : vector<32x256xf32>
    %190 = arith.addf %184, %189 : vector<32x256xf32>
    %c240_i32_135 = arith.constant 240 : i32
    %191 = tpu.dynamic_rotate %180 by %c240_i32_135 dim 1 : vector<32x256xf32>, i32 -> vector<32x256xf32>
    %c1_136 = arith.constant 1 : index
    %c8_137 = arith.constant 8 : index
    %c0_138 = arith.constant 0 : index
    %c0_139 = arith.constant 0 : index
    %192 = vector.load %arg5[%c1_136, %c8_137, %c0_138, %c0_139] : memref<2x9x1x256xf32, #tpu.memory_space<vmem>>, vector<1x1x1x256xf32>
    %193 = vector.shape_cast %192 : vector<1x1x1x256xf32> to vector<1x256xf32>
    %194 = vector.broadcast %193 : vector<1x256xf32> to vector<32x256xf32>
    %195 = arith.mulf %191, %194 : vector<32x256xf32>
    %196 = arith.addf %190, %195 : vector<32x256xf32>
    %c0_140 = arith.constant 0 : index
    %c0_141 = arith.constant 0 : index
    %197 = vector.load %arg11[%c0_140, %c0_141] : memref<32x256xf32, #tpu.memory_space<vmem>>, vector<32x256xf32>
    %198 = arith.addf %197, %196 : vector<32x256xf32>
    %c0_142 = arith.constant 0 : index
    %c0_143 = arith.constant 0 : index
    %199 = vector.load %arg11[%c0_142, %c0_143] : memref<32x256xf32, #tpu.memory_space<vmem>>, vector<32x256xf32>
    tpu.vector_store %arg11[%c0_142, %c0_143], %198 {strides = array<i32>} : memref<32x256xf32, #tpu.memory_space<vmem>>, vector<32x256xf32>,
    %c0_144 = arith.constant 0 : index
    %c0_145 = arith.constant 0 : index
    %200 = vector.load %arg11[%c0_144, %c0_145] : memref<32x256xf32, #tpu.memory_space<vmem>>, vector<32x256xf32>
    %c1_146 = arith.constant 1 : index
    %c0_147 = arith.constant 0 : index
    %c0_148 = arith.constant 0 : index
    %201 = vector.load %arg6[%c1_146, %c0_147, %c0_148] : memref<2x1x256xf32, #tpu.memory_space<vmem>>, vector<1x1x256xf32>
    %202 = vector.shape_cast %201 : vector<1x1x256xf32> to vector<1x256xf32>
    %203 = vector.broadcast %202 : vector<1x256xf32> to vector<32x256xf32>
    %204 = arith.addf %200, %203 : vector<32x256xf32>
    %cst_149 = arith.constant 0.000000e+00 : f32
    %205 = vector.broadcast %cst_149 : f32 to vector<32x256xf32>
    %206 = arith.cmpf ogt, %204, %205 : vector<32x256xf32>
    %c1_150 = arith.constant 1 : index
    %c0_151 = arith.constant 0 : index
    %c0_152 = arith.constant 0 : index
    %207 = vector.load %arg7[%c1_150, %c0_151, %c0_152] : memref<2x1x256xf32, #tpu.memory_space<vmem>>, vector<1x1x256xf32>
    %208 = vector.shape_cast %207 : vector<1x1x256xf32> to vector<1x256xf32>
    %209 = vector.broadcast %208 : vector<1x256xf32> to vector<32x256xf32>
    %210 = arith.mulf %209, %204 : vector<32x256xf32>
    %211 = arith.select %206, %204, %210 : vector<32x256xi1>, vector<32x256xf32>
    %c1_153 = arith.constant 1 : index
    %c0_154 = arith.constant 0 : index
    %c0_155 = arith.constant 0 : index
    %212 = vector.load %arg8[%c1_153, %c0_154, %c0_155] : memref<2x256x128xf32, #tpu.memory_space<vmem>>, vector<1x256x128xf32>
    %213 = vector.shape_cast %212 : vector<1x256x128xf32> to vector<256x128xf32>
    %cst_156 = arith.constant dense<0.000000e+00> : vector<32x128xf32>
    %214 = tpu.matmul %211, %213, %cst_156 {dimension_numbers = #tpu.dot_dimension_numbers<[1], [0], [0], [1], [0, 0, 1, 1], [], []>} : vector<32x256xf32>, vector<256x128xf32>, vector<32x128xf32> -> vector<32x128xf32>
    %215 = arith.addf %120, %214 : vector<32x128xf32>
    %c1_157 = arith.constant 1 : index
    %c0_158 = arith.constant 0 : index
    %c0_159 = arith.constant 0 : index
    %216 = vector.load %arg9[%c1_157, %c0_158, %c0_159] : memref<2x1x128xf32, #tpu.memory_space<vmem>>, vector<1x1x128xf32>
    %217 = vector.shape_cast %216 : vector<1x1x128xf32> to vector<1x128xf32>
    %218 = vector.broadcast %217 : vector<1x128xf32> to vector<32x128xf32>
    %219 = arith.addf %215, %218 : vector<32x128xf32>
    %c0_160 = arith.constant 0 : index
    %c0_161 = arith.constant 0 : index
    %220 = vector.load %arg10[%c0_160, %c0_161] : memref<32x128xf32, #tpu.memory_space<vmem>>, vector<32x128xf32>
    tpu.vector_store %arg10[%c0_160, %c0_161], %219 {strides = array<i32>} : memref<32x128xf32, #tpu.memory_space<vmem>>, vector<32x128xf32>,
    return
  }
  func.func @transform_0(%arg0: i32) -> (i32, i32) {
    %c0_i32 = arith.constant 0 : i32
    %c0_i32_0 = arith.constant 0 : i32
    return %arg0, %c0_i32 : i32, i32
  }
  func.func @transform_1(%arg0: i32) -> (i32, i32, i32) {
    %c0_i32 = arith.constant 0 : i32
    %c0_i32_0 = arith.constant 0 : i32
    %c0_i32_1 = arith.constant 0 : i32
    %c0_i32_2 = arith.constant 0 : i32
    return %c0_i32, %c0_i32_0, %c0_i32_1 : i32, i32, i32
  }
  func.func @transform_2(%arg0: i32) -> (i32, i32, i32) {
    %c0_i32 = arith.constant 0 : i32
    %c0_i32_0 = arith.constant 0 : i32
    %c0_i32_1 = arith.constant 0 : i32
    %c0_i32_2 = arith.constant 0 : i32
    return %c0_i32, %c0_i32_0, %c0_i32_1 : i32, i32, i32
  }
  func.func @transform_3(%arg0: i32) -> (i32, i32, i32) {
    %c0_i32 = arith.constant 0 : i32
    %c0_i32_0 = arith.constant 0 : i32
    %c0_i32_1 = arith.constant 0 : i32
    %c0_i32_2 = arith.constant 0 : i32
    return %c0_i32, %c0_i32_0, %c0_i32_1 : i32, i32, i32
  }
  func.func @transform_4(%arg0: i32) -> (i32, i32, i32, i32) {
    %c0_i32 = arith.constant 0 : i32
    %c0_i32_0 = arith.constant 0 : i32
    %c0_i32_1 = arith.constant 0 : i32
    %c0_i32_2 = arith.constant 0 : i32
    %c0_i32_3 = arith.constant 0 : i32
    return %c0_i32, %c0_i32_0, %c0_i32_1, %c0_i32_2 : i32, i32, i32, i32
  }
  func.func @transform_5(%arg0: i32) -> (i32, i32, i32) {
    %c0_i32 = arith.constant 0 : i32
    %c0_i32_0 = arith.constant 0 : i32
    %c0_i32_1 = arith.constant 0 : i32
    %c0_i32_2 = arith.constant 0 : i32
    return %c0_i32, %c0_i32_0, %c0_i32_1 : i32, i32, i32
  }
  func.func @transform_6(%arg0: i32) -> (i32, i32, i32) {
    %c0_i32 = arith.constant 0 : i32
    %c0_i32_0 = arith.constant 0 : i32
    %c0_i32_1 = arith.constant 0 : i32
    %c0_i32_2 = arith.constant 0 : i32
    return %c0_i32, %c0_i32_0, %c0_i32_1 : i32, i32, i32
  }
  func.func @transform_7(%arg0: i32) -> (i32, i32, i32) {
    %c0_i32 = arith.constant 0 : i32
    %c0_i32_0 = arith.constant 0 : i32
    %c0_i32_1 = arith.constant 0 : i32
    %c0_i32_2 = arith.constant 0 : i32
    return %c0_i32, %c0_i32_0, %c0_i32_1 : i32, i32, i32
  }
  func.func @transform_8(%arg0: i32) -> (i32, i32, i32) {
    %c0_i32 = arith.constant 0 : i32
    %c0_i32_0 = arith.constant 0 : i32
    %c0_i32_1 = arith.constant 0 : i32
    %c0_i32_2 = arith.constant 0 : i32
    return %c0_i32, %c0_i32_0, %c0_i32_1 : i32, i32, i32
  }
  func.func @transform_9(%arg0: i32) -> (i32, i32) {
    %c0_i32 = arith.constant 0 : i32
    %c0_i32_0 = arith.constant 0 : i32
    return %arg0, %c0_i32 : i32, i32
  }
}

</mosaic_0001>

<llo_original>
// kernel: tpu_custom_call.1
$region0: #{tpu_custom_call.1}
  #allocation0 [shape = 'u32[]', space=smem, size = 0x4, offset = 0x4, fixed_abs, tag = 'smem constant byte address 0x4 - core index']
  #allocation1 [shape = 'u32[144,128]{1,0:T(1,128)}', space=vmem, size = 0x12000, scoped, tag = 'internal scratch']
  #allocation2 [shape = 'f32[32,256]{1,0:T(8,128)}', space=vmem, size = 0x8000, scoped, tag = 'scratch operand']
  %s0 = inlined_call_operand.hbm [shape: f32[32,128], index: 0, kind: input, shape index: {}, may-alias: {0,9}]
  %s1 = inlined_call_operand.hbm [shape: f32[2,128,256], index: 1, kind: input, shape index: {}]
  %s2 = inlined_call_operand.vmem [shape: f32[2,1,256], index: 2, kind: input, shape index: {}]
  %s3 = inlined_call_operand.vmem [shape: f32[2,1,256], index: 3, kind: input, shape index: {}]
  %s4 = inlined_call_operand.vmem [shape: f32[2,9,1,256], index: 4, kind: input, shape index: {}]
  %s5 = inlined_call_operand.vmem [shape: f32[2,1,256], index: 5, kind: input, shape index: {}]
  %s6 = inlined_call_operand.vmem [shape: f32[2,1,256], index: 6, kind: input, shape index: {}]
  %s7 = inlined_call_operand.hbm [shape: f32[2,256,128], index: 7, kind: input, shape index: {}]
  %s8 = inlined_call_operand.vmem [shape: f32[2,1,128], index: 8, kind: input, shape index: {}]
  %s9 = inlined_call_operand.hbm [shape: f32[32,128], index: 9, kind: output, shape index: {}, may-alias: {0,9}]
  %s10 = sld [smem:[#allocation0]]
  $region58: #{tpu_custom_call.1} parent=0
    _
  %s12 = ssub.s32 1, %s10
  %s13 = scalar_select 0, %s12, %s10
  $region1: #{tpu_custom_call.1} parent=0
    #allocation3 [shape = 'u8[16384]{0}', space=vmem, size = 0x4000, scoped, tag = 'input window, operand 0, single buffered']
    #allocation4 [shape = 's32[1]{0}', space=sflag, size = 0x4, scoped, tag = 'scoped memory for tpu_custom_call.1']
    #allocation5 [shape = 's32[1]{0}', space=sflag, size = 0x4, scoped, tag = 'scoped memory for tpu_custom_call.1']
    #allocation6 [shape = 'u8[262144]{0}', space=vmem, size = 0x40000, scoped, tag = 'input window, operand 1, single buffered']
    #allocation7 [shape = 's32[1]{0}', space=sflag, size = 0x4, scoped, tag = 'scoped memory for tpu_custom_call.1']
    #allocation8 [shape = 'u8[262144]{0}', space=vmem, size = 0x40000, scoped, tag = 'input window, operand 7, single buffered']
    #allocation9 [shape = 'u8[16384]{0}', space=vmem, size = 0x4000, scoped, tag = 'output window, operand 0, single buffered']
    %14 = vsyncpa [#allocation4], 0
    %15 = vsyncpa [#allocation7], 0
    %16 = vsyncpa [#allocation5], 0
    // Predicated region
    $region2: #{tpu_custom_call.1} parent=1 // pred_check
      _
    $region3: #{tpu_custom_call.1} parent=1 // pred_check_branch
      %18 = sbr.rel (0) target = $region5
    $region4: #{tpu_custom_call.1} parent=1 // pred_region
      %s20 = ssub.s32 512, 512
      %21 = vsyncadd [#allocation4], %s20
      %s22 = sshll.u32 [#allocation3], 4
      %s23 = int_to_ptr.vmem [resolvable:$true] %s22
      %28 = dma.hbm_to_vmem [thread:$0]  %s0, 512, %s23, [#allocation4], 128, 128, 8
    $region5: #{tpu_custom_call.1} parent=1 // pred_fallthru
      _
    // Predicated region
    $region6: #{tpu_custom_call.1} parent=1 // pred_check
      _
    $region7: #{tpu_custom_call.1} parent=1 // pred_check_branch
      %30 = sbr.rel (0) target = $region9
    $region8: #{tpu_custom_call.1} parent=1 // pred_region
      %s32 = ssub.s32 8192, 8192
      %33 = vsyncadd [#allocation7], %s32
      %s34 = sshll.u32 [#allocation6], 4
      %s35 = int_to_ptr.vmem [resolvable:$true] %s34
      %40 = dma.hbm_to_vmem [thread:$0]  %s1, 8192, %s35, [#allocation7], 256, 256, 16
    $region9: #{tpu_custom_call.1} parent=1 // pred_fallthru
      _
    // Predicated region
    $region10: #{tpu_custom_call.1} parent=1 // pred_check
      _
    $region11: #{tpu_custom_call.1} parent=1 // pred_check_branch
      %42 = sbr.rel (0) target = $region13
    $region12: #{tpu_custom_call.1} parent=1 // pred_region
      _
    $region13: #{tpu_custom_call.1} parent=1 // pred_fallthru
      _
    // Predicated region
    $region14: #{tpu_custom_call.1} parent=1 // pred_check
      _
    $region15: #{tpu_custom_call.1} parent=1 // pred_check_branch
      %44 = sbr.rel (0) target = $region17
    $region16: #{tpu_custom_call.1} parent=1 // pred_region
      _
    $region17: #{tpu_custom_call.1} parent=1 // pred_fallthru
      _
    // Predicated region
    $region18: #{tpu_custom_call.1} parent=1 // pred_check
      _
    $region19: #{tpu_custom_call.1} parent=1 // pred_check_branch
      %46 = sbr.rel (0) target = $region21
    $region20: #{tpu_custom_call.1} parent=1 // pred_region
      _
    $region21: #{tpu_custom_call.1} parent=1 // pred_fallthru
      _
    // Predicated region
    $region22: #{tpu_custom_call.1} parent=1 // pred_check
      _
    $region23: #{tpu_custom_call.1} parent=1 // pred_check_branch
      %48 = sbr.rel (0) target = $region25
    $region24: #{tpu_custom_call.1} parent=1 // pred_region
      _
    $region25: #{tpu_custom_call.1} parent=1 // pred_fallthru
      _
    // Predicated region
    $region26: #{tpu_custom_call.1} parent=1 // pred_check
      _
    $region27: #{tpu_custom_call.1} parent=1 // pred_check_branch
      %50 = sbr.rel (0) target = $region29
    $region28: #{tpu_custom_call.1} parent=1 // pred_region
      _
    $region29: #{tpu_custom_call.1} parent=1 // pred_fallthru
      _
    // Predicated region
    $region30: #{tpu_custom_call.1} parent=1 // pred_check
      _
    $region31: #{tpu_custom_call.1} parent=1 // pred_check_branch
      %52 = sbr.rel (0) target = $region33
    $region32: #{tpu_custom_call.1} parent=1 // pred_region
      %s54 = ssub.s32 8192, 8192
      %55 = vsyncadd [#allocation7], %s54
      %s56 = sshll.u32 [#allocation8], 4
      %s57 = int_to_ptr.vmem [resolvable:$true] %s56
      %62 = dma.hbm_to_vmem [thread:$0]  %s7, 8192, %s57, [#allocation7], 128, 128, 8
    $region33: #{tpu_custom_call.1} parent=1 // pred_fallthru
      _
    // Predicated region
    $region34: #{tpu_custom_call.1} parent=1 // pred_check
      _
    $region35: #{tpu_custom_call.1} parent=1 // pred_check_branch
      %64 = sbr.rel (0) target = $region37
    $region36: #{tpu_custom_call.1} parent=1 // pred_region
      _
    $region37: #{tpu_custom_call.1} parent=1 // pred_fallthru
      _
    // Predicated region
    $region38: #{tpu_custom_call.1} parent=1 // pred_check
      _
    $region39: #{tpu_custom_call.1} parent=1 // pred_check_branch
      %66 = sbr.rel (0) target = $region41
    $region40: #{tpu_custom_call.1} parent=1 // pred_region
      %67 = dma.done [#allocation4], 512
    $region41: #{tpu_custom_call.1} parent=1 // pred_fallthru
      _
    // Predicated region
    $region42: #{tpu_custom_call.1} parent=1 // pred_check
      _
    $region43: #{tpu_custom_call.1} parent=1 // pred_check_branch
      %69 = sbr.rel (0) target = $region45
    $region44: #{tpu_custom_call.1} parent=1 // pred_region
      %70 = dma.done [#allocation7], 8192
    $region45: #{tpu_custom_call.1} parent=1 // pred_fallthru
      _
    // Predicated region
    $region46: #{tpu_custom_call.1} parent=1 // pred_check
      _
    $region47: #{tpu_custom_call.1} parent=1 // pred_check_branch
      %72 = sbr.rel (0) target = $region49
    $region48: #{tpu_custom_call.1} parent=1 // pred_region
      %73 = dma.done [#allocation7], 8192
    $region49: #{tpu_custom_call.1} parent=1 // pred_fallthru
      _
    %v74 = vlaneseq
    %v75 = vshrl.u32 %v74, 7
    %v76 = vadd.s32 %v75, 8
    %v77 = vadd.s32 %v75, 16
    %v78 = vadd.s32 %v75, 24
    %vm79 = vcmp.lt.s32.totalorder %v75, 0
    %v80 = vsub.s32 0, %v75
    %v81 = vsel %vm79, %v80, %v75
    %v82 = vshrl.u32 %v81, 4
    %v83 = vand.u32 %v81, 15
    %v84 = vsub.s32 0, %v83
    %v85 = vsel %vm79, %v84, %v83
    %vm86 = vcmp.lt.s32.totalorder %v76, 0
    %v87 = vsub.s32 0, %v76
    %v88 = vsel %vm86, %v87, %v76
    %v89 = vshrl.u32 %v88, 4
    %v90 = vand.u32 %v88, 15
    %v91 = vsub.s32 0, %v90
    %v92 = vsel %vm86, %v91, %v90
    %vm93 = vcmp.lt.s32.totalorder %v77, 0
    %v94 = vsub.s32 0, %v77
    %v95 = vsel %vm93, %v94, %v77
    %v96 = vshrl.u32 %v95, 4
    %v97 = vand.u32 %v95, 15
    %v98 = vsub.s32 0, %v97
    %v99 = vsel %vm93, %v98, %v97
    %vm100 = vcmp.lt.s32.totalorder %v78, 0
    %v101 = vsub.s32 0, %v78
    %v102 = vsel %vm100, %v101, %v78
    %v103 = vshrl.u32 %v102, 4
    %v104 = vand.u32 %v102, 15
    %v105 = vsub.s32 0, %v104
    %v106 = vsel %vm100, %v105, %v104
    %vm107 = vcmp.ne.s32.totalorder %v85, 0
    %vm108 = vcmp.ne.s32.totalorder %v92, 0
    %vm109 = vcmp.ne.s32.totalorder %v99, 0
    %vm110 = vcmp.ne.s32.totalorder %v106, 0
    %vm111 = vcmp.lt.s32.totalorder %v85, 0
    %vm112 = vcmp.lt.s32.totalorder %v92, 0
    %vm113 = vcmp.lt.s32.totalorder %v99, 0
    %vm114 = vcmp.lt.s32.totalorder %v106, 0
    %vm115 = vmand %vm111, %vm107
    %vm116 = vmand %vm112, %vm108
    %vm117 = vmand %vm113, %vm109
    %vm118 = vmand %vm114, %vm110
    %v119 = vadd.s32 %v85, 16
    %v120 = vadd.s32 %v92, 16
    %v121 = vadd.s32 %v99, 16
    %v122 = vadd.s32 %v106, 16
    %v123 = vsel %vm115, %v119, %v85
    %v124 = vsel %vm116, %v120, %v92
    %v125 = vsel %vm117, %v121, %v99
    %v126 = vsel %vm118, %v122, %v106
    %vm127 = vcmp.ne.s32.totalorder %v123, 0
    %vm128 = vcmp.ne.s32.totalorder %v124, 0
    %vm129 = vcmp.ne.s32.totalorder %v125, 0
    %vm130 = vcmp.ne.s32.totalorder %v126, 0
    %vm131 = vcmp.ne.s32.totalorder %v123, 15
    %vm132 = vcmp.ne.s32.totalorder %v124, 15
    %vm133 = vcmp.ne.s32.totalorder %v125, 15
    %vm134 = vcmp.ne.s32.totalorder %v126, 15
    %v135 = vld [vmem:[#allocation3] sm:$0xff]
    %v136 = vld [vmem:[#allocation3 + $0x8] sm:$0xff]
    %v137 = vld [vmem:[#allocation3 + $0x10] sm:$0xff]
    %v138 = vld [vmem:[#allocation3 + $0x18] sm:$0xff]
    %v139 = vld [vmem:[#allocation6] sm:$0xff]
    %v140 = vld [vmem:[#allocation6 + $0x8] sm:$0xff]
    %v141 = vld [vmem:[#allocation6 + $0x10] sm:$0xff]
    %v142 = vld [vmem:[#allocation6 + $0x18] sm:$0xff]
    %v143 = vld [vmem:[#allocation6 + $0x20] sm:$0xff]
    %v144 = vld [vmem:[#allocation6 + $0x28] sm:$0xff]
    %v145 = vld [vmem:[#allocation6 + $0x30] sm:$0xff]
    %v146 = vld [vmem:[#allocation6 + $0x38] sm:$0xff]
    %v147 = vld [vmem:[#allocation6 + $0x40] sm:$0xff]
    %v148 = vld [vmem:[#allocation6 + $0x48] sm:$0xff]
    %v149 = vld [vmem:[#allocation6 + $0x50] sm:$0xff]
    %v150 = vld [vmem:[#allocation6 + $0x58] sm:$0xff]
    %v151 = vld [vmem:[#allocation6 + $0x60] sm:$0xff]
    %v152 = vld [vmem:[#allocation6 + $0x68] sm:$0xff]
    %v153 = vld [vmem:[#allocation6 + $0x70] sm:$0xff]
    %v154 = vld [vmem:[#allocation6 + $0x78] sm:$0xff]
    %v155 = vld [vmem:[#allocation6 + $0x80] sm:$0xff]
    %v156 = vld [vmem:[#allocation6 + $0x88] sm:$0xff]
    %v157 = vld [vmem:[#allocation6 + $0x90] sm:$0xff]
    %v158 = vld [vmem:[#allocation6 + $0x98] sm:$0xff]
    %v159 = vld [vmem:[#allocation6 + $0xa0] sm:$0xff]
    %v160 = vld [vmem:[#allocation6 + $0xa8] sm:$0xff]
    %v161 = vld [vmem:[#allocation6 + $0xb0] sm:$0xff]
    %v162 = vld [vmem:[#allocation6 + $0xb8] sm:$0xff]
    %v163 = vld [vmem:[#allocation6 + $0xc0] sm:$0xff]
    %v164 = vld [vmem:[#allocation6 + $0xc8] sm:$0xff]
    %v165 = vld [vmem:[#allocation6 + $0xd0] sm:$0xff]
    %v166 = vld [vmem:[#allocation6 + $0xd8] sm:$0xff]
    %v167 = vld [vmem:[#allocation6 + $0xe0] sm:$0xff]
    %v168 = vld [vmem:[#allocation6 + $0xe8] sm:$0xff]
    %v169 = vld [vmem:[#allocation6 + $0xf0] sm:$0xff]
    %v170 = vld [vmem:[#allocation6 + $0xf8] sm:$0xff]
    %v171 = vld [vmem:[%s2] sm:$0x3]
    %v173 = vlaneseq
    %v174 = vshrl.u32 %v173, 7
    %v175 = vsub.s32 0, %v174
    %v176 = vrot.slane %v171, %v175
    %v177 = vlaneseq
    %v178 = vshrl.u32 %v177, 7
    %v179 = vsub.s32 1, %v178
    %v180 = vrot.slane %v171, %v179
    %183 = vmatprep.subr.mxu0 %v140
    %184 = vmatpush1.msra.mxu0 %v139
    %185 = vmatprep.subr.mxu0 %v142
    %186 = vmatpush1.msra.mxu0 %v141
    %187 = vmatprep.subr.mxu0 %v144
    %188 = vmatpush1.msra.mxu0 %v143
    %189 = vmatprep.subr.mxu0 %v146
    %190 = vmatpush1.msra.mxu0 %v145
    %191 = vmatprep.subr.mxu0 %v148
    %192 = vmatpush1.msra.mxu0 %v147
    %193 = vmatprep.subr.mxu0 %v150
    %194 = vmatpush1.msra.mxu0 %v149
    %195 = vmatprep.subr.mxu0 %v152
    %196 = vmatpush1.msra.mxu0 %v151
    %197 = vmatprep.subr.mxu0 %v154
    %198 = vmatpush1.msra.mxu0 %v153
    %199 = vmatprep.subr.mxu0 %v156
    %200 = vmatpush1.msra.mxu0 %v155
    %201 = vmatprep.subr.mxu0 %v158
    %202 = vmatpush1.msra.mxu0 %v157
    %203 = vmatprep.subr.mxu0 %v160
    %204 = vmatpush1.msra.mxu0 %v159
    %205 = vmatprep.subr.mxu0 %v162
    %206 = vmatpush1.msra.mxu0 %v161
    %207 = vmatprep.subr.mxu0 %v164
    %208 = vmatpush1.msra.mxu0 %v163
    %209 = vmatprep.subr.mxu0 %v166
    %210 = vmatpush1.msra.mxu0 %v165
    %211 = vmatprep.subr.mxu0 %v168
    %212 = vmatpush1.msra.mxu0 %v167
    %213 = vmatprep.subr.mxu0 %v170
    %214 = vmatpush1.msra.mxu0 %v169
    %215 = vmatprep.subr.mxu0 0.0
    %216 = vmatpush1.msra.mxu0 0.0
    %217 = vmatprep.subr.mxu0 0.0
    %218 = vmatpush1.msra.mxu0 0.0
    %219 = vmatprep.subr.mxu0 0.0
    %220 = vmatpush1.msra.mxu0 0.0
    %221 = vmatprep.subr.mxu0 0.0
    %222 = vmatpush1.msra.mxu0 0.0
    %223 = vmatprep.subr.mxu0 0.0
    %224 = vmatpush1.msra.mxu0 0.0
    %225 = vmatprep.subr.mxu0 0.0
    %226 = vmatpush1.msra.mxu0 0.0
    %227 = vmatprep.subr.mxu0 0.0
    %228 = vmatpush1.msra.mxu0 0.0
    %229 = vmatprep.subr.mxu0 0.0
    %230 = vmatpush1.msra.mxu0 0.0
    %231 = vmatprep.subr.mxu0 0.0
    %232 = vmatpush1.msra.mxu0 0.0
    %233 = vmatprep.subr.mxu0 0.0
    %234 = vmatpush1.msra.mxu0 0.0
    %235 = vmatprep.subr.mxu0 0.0
    %236 = vmatpush1.msra.mxu0 0.0
    %237 = vmatprep.subr.mxu0 0.0
    %238 = vmatpush1.msra.mxu0 0.0
    %239 = vmatprep.subr.mxu0 0.0
    %240 = vmatpush1.msra.mxu0 0.0
    %241 = vmatprep.subr.mxu0 0.0
    %242 = vmatpush1.msra.mxu0 0.0
    %243 = vmatprep.subr.mxu0 0.0
    %244 = vmatpush1.msra.mxu0 0.0
    %245 = vmatprep.subr.mxu0 0.0
    %246 = vmatpush1.msra.mxu0 0.0
    %247 = vmatprep.mubr.f32.mxu0 0.0
    %248 = vmatmul.mubr.f32.gmra.mrb[0].mxu0 %v135
    %v249 = vpop.f32.mrb[0].mxu0
    %v250 = vadd.f32 %v176, %v249
    %v251 = vpop.f32.mrb[0].mxu0
    %v252 = vadd.f32 %v180, %v251
    %253 = vmatprep.mubr.f32.mxu0 0.0
    %254 = vmatmul.mubr.f32.gmra.mrb[0].mxu0 %v136
    %v255 = vpop.f32.mrb[0].mxu0
    %v256 = vadd.f32 %v176, %v255
    %v257 = vpop.f32.mrb[0].mxu0
    %v258 = vadd.f32 %v180, %v257
    %259 = vmatprep.mubr.f32.mxu0 0.0
    %260 = vmatmul.mubr.f32.gmra.mrb[0].mxu0 %v137
    %v261 = vpop.f32.mrb[0].mxu0
    %v262 = vadd.f32 %v176, %v261
    %v263 = vpop.f32.mrb[0].mxu0
    %v264 = vadd.f32 %v180, %v263
    %265 = vmatprep.mubr.f32.mxu0 0.0
    %266 = vmatmul.mubr.f32.gmra.mrb[0].mxu0 %v138
    %v267 = vpop.f32.mrb[0].mxu0
    %v268 = vadd.f32 %v176, %v267
    %v269 = vpop.f32.mrb[0].mxu0
    %v270 = vadd.f32 %v180, %v269
    %271 = vdwg.mxu0
    %vm272 = vcmp.gt.f32.partialorder %v250, 0.0
    %vm273 = vcmp.gt.f32.partialorder %v252, 0.0
    %vm274 = vcmp.gt.f32.partialorder %v256, 0.0
    %vm275 = vcmp.gt.f32.partialorder %v258, 0.0
    %vm276 = vcmp.gt.f32.partialorder %v262, 0.0
    %vm277 = vcmp.gt.f32.partialorder %v264, 0.0
    %vm278 = vcmp.gt.f32.partialorder %v268, 0.0
    %vm279 = vcmp.gt.f32.partialorder %v270, 0.0
    %v280 = vld [vmem:[%s3] sm:$0x3]
    %v282 = vlaneseq
    %v283 = vshrl.u32 %v282, 7
    %v284 = vsub.s32 0, %v283
    %v285 = vrot.slane %v280, %v284
    %v286 = vlaneseq
    %v287 = vshrl.u32 %v286, 7
    %v288 = vsub.s32 1, %v287
    %v289 = vrot.slane %v280, %v288
    %v292 = vmul.f32 %v285, %v250
    %v293 = vmul.f32 %v289, %v252
    %v294 = vmul.f32 %v285, %v256
    %v295 = vmul.f32 %v289, %v258
    %v296 = vmul.f32 %v285, %v262
    %v297 = vmul.f32 %v289, %v264
    %v298 = vmul.f32 %v285, %v268
    %v299 = vmul.f32 %v289, %v270
    %v300 = vsel %vm272, %v250, %v292
    %v301 = vsel %vm273, %v252, %v293
    %v302 = vsel %vm274, %v256, %v294
    %v303 = vsel %vm275, %v258, %v295
    %v304 = vsel %vm276, %v262, %v296
    %v305 = vsel %vm277, %v264, %v297
    %v306 = vsel %vm278, %v268, %v298
    %v307 = vsel %vm279, %v270, %v299
    %v308 = vrot.slane %v300, 7
    %v309 = vrot.slane %v301, 7
    %v310 = vrot.slane %v302, 7
    %v311 = vrot.slane %v303, 7
    %v312 = vrot.slane %v304, 7
    %v313 = vrot.slane %v305, 7
    %v314 = vrot.slane %v306, 7
    %v315 = vrot.slane %v307, 7
    %vm316 = vcmp.lt.s32.totalorder %v75, 1
    %v317 = vsel %vm316, %v312, %v314
    %v318 = vsel %vm316, %v313, %v315
    %v319 = vsel %vm316, %v310, %v312
    %v320 = vsel %vm316, %v311, %v313
    %v321 = vsel %vm316, %v308, %v310
    %v322 = vsel %vm316, %v309, %v311
    %v323 = vsel %vm316, %v314, %v308
    %v324 = vsel %vm316, %v315, %v309
    %v325 = vsel %vm127, 1, 0
    %v326 = vsel %vm128, 1, 0
    %v327 = vsel %vm129, 1, 0
    %v328 = vsel %vm130, 1, 0
    %vm329 = vcmp.eq.s32.totalorder %v325, 1
    %vm330 = vcmp.eq.s32.totalorder %v326, 1
    %vm331 = vcmp.eq.s32.totalorder %v327, 1
    %vm332 = vcmp.eq.s32.totalorder %v328, 1
    %v333 = vsel %vm329, %v323, 0.0
    %v334 = vsel %vm329, %v324, 0.0
    %v335 = vsel %vm330, %v321, 0.0
    %v336 = vsel %vm330, %v322, 0.0
    %v337 = vsel %vm331, %v319, 0.0
    %v338 = vsel %vm331, %v320, 0.0
    %v339 = vsel %vm332, %v317, 0.0
    %v340 = vsel %vm332, %v318, 0.0
    %s341 = scalar_lea.vmem %s4, 2
    %v342 = vld [vmem:[%s341] sm:$0x3]
    %v344 = vlaneseq
    %v345 = vshrl.u32 %v344, 7
    %v346 = vsub.s32 0, %v345
    %v347 = vrot.slane %v342, %v346
    %v348 = vlaneseq
    %v349 = vshrl.u32 %v348, 7
    %v350 = vsub.s32 1, %v349
    %v351 = vrot.slane %v342, %v350
    %v354 = vmul.f32 %v333, %v347
    %v355 = vmul.f32 %v334, %v351
    %v356 = vmul.f32 %v335, %v347
    %v357 = vmul.f32 %v336, %v351
    %v358 = vmul.f32 %v337, %v347
    %v359 = vmul.f32 %v338, %v351
    %v360 = vmul.f32 %v339, %v347
    %v361 = vmul.f32 %v340, %v351
    %362 = vrot.lane.b32.xlu0 %v333, 16
    %v363 = vpop.permute.xlu0 %362
    %364 = vrot.lane.b32.xlu0 %v335, 16
    %v365 = vpop.permute.xlu0 %364
    %366 = vrot.lane.b32.xlu0 %v337, 16
    %v367 = vpop.permute.xlu0 %366
    %368 = vrot.lane.b32.xlu0 %v339, 16
    %v369 = vpop.permute.xlu0 %368
    %370 = vrot.lane.b32.xlu0 %v334, 16
    %v371 = vpop.permute.xlu0 %370
    %372 = vrot.lane.b32.xlu0 %v336, 16
    %v373 = vpop.permute.xlu0 %372
    %374 = vrot.lane.b32.xlu0 %v338, 16
    %v375 = vpop.permute.xlu0 %374
    %376 = vrot.lane.b32.xlu0 %v340, 16
    %v377 = vpop.permute.xlu0 %376
    %v378 = vlaneseq
    %v379 = vand.u32 %v378, 127
    %vm380 = vcmp.lt.s32.totalorder %v379, 16
    %v381 = vsel %vm380, %v363, %v371
    %v382 = vsel %vm380, %v365, %v373
    %v383 = vsel %vm380, %v367, %v375
    %v384 = vsel %vm380, %v369, %v377
    %v385 = vsel %vm380, %v371, %v363
    %v386 = vsel %vm380, %v373, %v365
    %v387 = vsel %vm380, %v375, %v367
    %v388 = vsel %vm380, %v377, %v369
    %v389 = vld [vmem:[%s4] sm:$0x3]
    %v391 = vlaneseq
    %v392 = vshrl.u32 %v391, 7
    %v393 = vsub.s32 0, %v392
    %v394 = vrot.slane %v389, %v393
    %v395 = vlaneseq
    %v396 = vshrl.u32 %v395, 7
    %v397 = vsub.s32 1, %v396
    %v398 = vrot.slane %v389, %v397
    %v401 = vmul.f32 %v385, %v394
    %v402 = vmul.f32 %v381, %v398
    %v403 = vmul.f32 %v386, %v394
    %v404 = vmul.f32 %v382, %v398
    %v405 = vmul.f32 %v387, %v394
    %v406 = vmul.f32 %v383, %v398
    %v407 = vmul.f32 %v388, %v394
    %v408 = vmul.f32 %v384, %v398
    %v409 = vadd.f32 %v354, %v401
    %v410 = vadd.f32 %v355, %v402
    %v411 = vadd.f32 %v356, %v403
    %v412 = vadd.f32 %v357, %v404
    %v413 = vadd.f32 %v358, %v405
    %v414 = vadd.f32 %v359, %v406
    %v415 = vadd.f32 %v360, %v407
    %v416 = vadd.f32 %v361, %v408
    %417 = vrot.lane.b32.xlu0 %v333, 112
    %v418 = vpop.permute.xlu0 %417
    %419 = vrot.lane.b32.xlu0 %v335, 112
    %v420 = vpop.permute.xlu0 %419
    %421 = vrot.lane.b32.xlu0 %v337, 112
    %v422 = vpop.permute.xlu0 %421
    %423 = vrot.lane.b32.xlu0 %v339, 112
    %v424 = vpop.permute.xlu0 %423
    %425 = vrot.lane.b32.xlu0 %v334, 112
    %v426 = vpop.permute.xlu0 %425
    %427 = vrot.lane.b32.xlu0 %v336, 112
    %v428 = vpop.permute.xlu0 %427
    %429 = vrot.lane.b32.xlu0 %v338, 112
    %v430 = vpop.permute.xlu0 %429
    %431 = vrot.lane.b32.xlu0 %v340, 112
    %v432 = vpop.permute.xlu0 %431
    %vm433 = vcmp.lt.s32.totalorder %v379, 112
    %v434 = vsel %vm433, %v418, %v426
    %v435 = vsel %vm433, %v420, %v428
    %v436 = vsel %vm433, %v422, %v430
    %v437 = vsel %vm433, %v424, %v432
    %v438 = vsel %vm433, %v426, %v418
    %v439 = vsel %vm433, %v428, %v420
    %v440 = vsel %vm433, %v430, %v422
    %v441 = vsel %vm433, %v432, %v424
    %s442 = scalar_lea.vmem %s4, 4
    %v443 = vld [vmem:[%s442] sm:$0x3]
    %v445 = vlaneseq
    %v446 = vshrl.u32 %v445, 7
    %v447 = vsub.s32 0, %v446
    %v448 = vrot.slane %v443, %v447
    %v449 = vlaneseq
    %v450 = vshrl.u32 %v449, 7
    %v451 = vsub.s32 1, %v450
    %v452 = vrot.slane %v443, %v451
    %v455 = vmul.f32 %v434, %v448
    %v456 = vmul.f32 %v438, %v452
    %v457 = vmul.f32 %v435, %v448
    %v458 = vmul.f32 %v439, %v452
    %v459 = vmul.f32 %v436, %v448
    %v460 = vmul.f32 %v440, %v452
    %v461 = vmul.f32 %v437, %v448
    %v462 = vmul.f32 %v441, %v452
    %v463 = vadd.f32 %v409, %v455
    %v464 = vadd.f32 %v410, %v456
    %v465 = vadd.f32 %v411, %v457
    %v466 = vadd.f32 %v412, %v458
    %v467 = vadd.f32 %v413, %v459
    %v468 = vadd.f32 %v414, %v460
    %v469 = vadd.f32 %v415, %v461
    %v470 = vadd.f32 %v416, %v462
    %471 = vst [vmem:[#allocation2] sm:$0xff] %v463
    %472 = vst [vmem:[#allocation2 + $0x8] sm:$0xff] %v464
    %473 = vst [vmem:[#allocation2 + $0x10] sm:$0xff] %v465
    %474 = vst [vmem:[#allocation2 + $0x18] sm:$0xff] %v466
    %475 = vst [vmem:[#allocation2 + $0x20] sm:$0xff] %v467
    %476 = vst [vmem:[#allocation2 + $0x28] sm:$0xff] %v468
    %477 = vst [vmem:[#allocation2 + $0x30] sm:$0xff] %v469
    %478 = vst [vmem:[#allocation2 + $0x38] sm:$0xff] %v470
    %s479 = scalar_lea.vmem %s4, 8
    %v480 = vld [vmem:[%s479] sm:$0x3]
    %v482 = vlaneseq
    %v483 = vshrl.u32 %v482, 7
    %v484 = vsub.s32 0, %v483
    %v485 = vrot.slane %v480, %v484
    %v486 = vlaneseq
    %v487 = vshrl.u32 %v486, 7
    %v488 = vsub.s32 1, %v487
    %v489 = vrot.slane %v480, %v488
    %v492 = vmul.f32 %v300, %v485
    %v493 = vmul.f32 %v301, %v489
    %v494 = vmul.f32 %v302, %v485
    %v495 = vmul.f32 %v303, %v489
    %v496 = vmul.f32 %v304, %v485
    %v497 = vmul.f32 %v305, %v489
    %v498 = vmul.f32 %v306, %v485
    %v499 = vmul.f32 %v307, %v489
    %500 = vrot.lane.b32.xlu0 %v300, 16
    %v501 = vpop.permute.xlu0 %500
    %502 = vrot.lane.b32.xlu0 %v302, 16
    %v503 = vpop.permute.xlu0 %502
    %504 = vrot.lane.b32.xlu0 %v304, 16
    %v505 = vpop.permute.xlu0 %504
    %506 = vrot.lane.b32.xlu0 %v306, 16
    %v507 = vpop.permute.xlu0 %506
    %508 = vrot.lane.b32.xlu0 %v301, 16
    %v509 = vpop.permute.xlu0 %508
    %510 = vrot.lane.b32.xlu0 %v303, 16
    %v511 = vpop.permute.xlu0 %510
    %512 = vrot.lane.b32.xlu0 %v305, 16
    %v513 = vpop.permute.xlu0 %512
    %514 = vrot.lane.b32.xlu0 %v307, 16
    %v515 = vpop.permute.xlu0 %514
    %v516 = vsel %vm380, %v501, %v509
    %v517 = vsel %vm380, %v503, %v511
    %v518 = vsel %vm380, %v505, %v513
    %v519 = vsel %vm380, %v507, %v515
    %v520 = vsel %vm380, %v509, %v501
    %v521 = vsel %vm380, %v511, %v503
    %v522 = vsel %vm380, %v513, %v505
    %v523 = vsel %vm380, %v515, %v507
    %s524 = scalar_lea.vmem %s4, 6
    %v525 = vld [vmem:[%s524] sm:$0x3]
    %v527 = vlaneseq
    %v528 = vshrl.u32 %v527, 7
    %v529 = vsub.s32 0, %v528
    %v530 = vrot.slane %v525, %v529
    %v531 = vlaneseq
    %v532 = vshrl.u32 %v531, 7
    %v533 = vsub.s32 1, %v532
    %v534 = vrot.slane %v525, %v533
    %v537 = vmul.f32 %v520, %v530
    %v538 = vmul.f32 %v516, %v534
    %v539 = vmul.f32 %v521, %v530
    %v540 = vmul.f32 %v517, %v534
    %v541 = vmul.f32 %v522, %v530
    %v542 = vmul.f32 %v518, %v534
    %v543 = vmul.f32 %v523, %v530
    %v544 = vmul.f32 %v519, %v534
    %v545 = vadd.f32 %v492, %v537
    %v546 = vadd.f32 %v493, %v538
    %v547 = vadd.f32 %v494, %v539
    %v548 = vadd.f32 %v495, %v540
    %v549 = vadd.f32 %v496, %v541
    %v550 = vadd.f32 %v497, %v542
    %v551 = vadd.f32 %v498, %v543
    %v552 = vadd.f32 %v499, %v544
    %553 = vrot.lane.b32.xlu0 %v300, 112
    %v554 = vpop.permute.xlu0 %553
    %555 = vrot.lane.b32.xlu0 %v302, 112
    %v556 = vpop.permute.xlu0 %555
    %557 = vrot.lane.b32.xlu0 %v304, 112
    %v558 = vpop.permute.xlu0 %557
    %559 = vrot.lane.b32.xlu0 %v306, 112
    %v560 = vpop.permute.xlu0 %559
    %561 = vrot.lane.b32.xlu0 %v301, 112
    %v562 = vpop.permute.xlu0 %561
    %563 = vrot.lane.b32.xlu0 %v303, 112
    %v564 = vpop.permute.xlu0 %563
    %565 = vrot.lane.b32.xlu0 %v305, 112
    %v566 = vpop.permute.xlu0 %565
    %567 = vrot.lane.b32.xlu0 %v307, 112
    %v568 = vpop.permute.xlu0 %567
    %v569 = vsel %vm433, %v554, %v562
    %v570 = vsel %vm433, %v556, %v564
    %v571 = vsel %vm433, %v558, %v566
    %v572 = vsel %vm433, %v560, %v568
    %v573 = vsel %vm433, %v562, %v554
    %v574 = vsel %vm433, %v564, %v556
    %v575 = vsel %vm433, %v566, %v558
    %v576 = vsel %vm433, %v568, %v560
    %s577 = scalar_lea.vmem %s4, 10
    %v578 = vld [vmem:[%s577] sm:$0x3]
    %v580 = vlaneseq
    %v581 = vshrl.u32 %v580, 7
    %v582 = vsub.s32 0, %v581
    %v583 = vrot.slane %v578, %v582
    %v584 = vlaneseq
    %v585 = vshrl.u32 %v584, 7
    %v586 = vsub.s32 1, %v585
    %v587 = vrot.slane %v578, %v586
    %v590 = vmul.f32 %v569, %v583
    %v591 = vmul.f32 %v573, %v587
    %v592 = vmul.f32 %v570, %v583
    %v593 = vmul.f32 %v574, %v587
    %v594 = vmul.f32 %v571, %v583
    %v595 = vmul.f32 %v575, %v587
    %v596 = vmul.f32 %v572, %v583
    %v597 = vmul.f32 %v576, %v587
    %v598 = vadd.f32 %v545, %v590
    %v599 = vadd.f32 %v546, %v591
    %v600 = vadd.f32 %v547, %v592
    %v601 = vadd.f32 %v548, %v593
    %v602 = vadd.f32 %v549, %v594
    %v603 = vadd.f32 %v550, %v595
    %v604 = vadd.f32 %v551, %v596
    %v605 = vadd.f32 %v552, %v597
    %v606 = vld [vmem:[#allocation2] sm:$0xff]
    %v607 = vld [vmem:[#allocation2 + $0x8] sm:$0xff]
    %v608 = vld [vmem:[#allocation2 + $0x10] sm:$0xff]
    %v609 = vld [vmem:[#allocation2 + $0x18] sm:$0xff]
    %v610 = vld [vmem:[#allocation2 + $0x20] sm:$0xff]
    %v611 = vld [vmem:[#allocation2 + $0x28] sm:$0xff]
    %v612 = vld [vmem:[#allocation2 + $0x30] sm:$0xff]
    %v613 = vld [vmem:[#allocation2 + $0x38] sm:$0xff]
    %v614 = vadd.f32 %v606, %v598
    %v615 = vadd.f32 %v607, %v599
    %v616 = vadd.f32 %v608, %v600
    %v617 = vadd.f32 %v609, %v601
    %v618 = vadd.f32 %v610, %v602
    %v619 = vadd.f32 %v611, %v603
    %v620 = vadd.f32 %v612, %v604
    %v621 = vadd.f32 %v613, %v605
    %622 = vst [vmem:[#allocation2] sm:$0xff] %v614
    %623 = vst [vmem:[#allocation2 + $0x8] sm:$0xff] %v615
    %624 = vst [vmem:[#allocation2 + $0x10] sm:$0xff] %v616
    %625 = vst [vmem:[#allocation2 + $0x18] sm:$0xff] %v617
    %626 = vst [vmem:[#allocation2 + $0x20] sm:$0xff] %v618
    %627 = vst [vmem:[#allocation2 + $0x28] sm:$0xff] %v619
    %628 = vst [vmem:[#allocation2 + $0x30] sm:$0xff] %v620
    %629 = vst [vmem:[#allocation2 + $0x38] sm:$0xff] %v621
    %v630 = vrot.slane %v300, 1
    %v631 = vrot.slane %v301, 1
    %v632 = vrot.slane %v302, 1
    %v633 = vrot.slane %v303, 1
    %v634 = vrot.slane %v304, 1
    %v635 = vrot.slane %v305, 1
    %v636 = vrot.slane %v306, 1
    %v637 = vrot.slane %v307, 1
    %vm638 = vcmp.lt.s32.totalorder %v75, 7
    %v639 = vsel %vm638, %v634, %v636
    %v640 = vsel %vm638, %v635, %v637
    %v641 = vsel %vm638, %v632, %v634
    %v642 = vsel %vm638, %v633, %v635
    %v643 = vsel %vm638, %v630, %v632
    %v644 = vsel %vm638, %v631, %v633
    %v645 = vsel %vm638, %v636, %v630
    %v646 = vsel %vm638, %v637, %v631
    %v647 = vsel %vm131, 1, 0
    %v648 = vsel %vm132, 1, 0
    %v649 = vsel %vm133, 1, 0
    %v650 = vsel %vm134, 1, 0
    %vm651 = vcmp.eq.s32.totalorder %v647, 1
    %vm652 = vcmp.eq.s32.totalorder %v648, 1
    %vm653 = vcmp.eq.s32.totalorder %v649, 1
    %vm654 = vcmp.eq.s32.totalorder %v650, 1
    %v655 = vsel %vm651, %v643, 0.0
    %v656 = vsel %vm651, %v644, 0.0
    %v657 = vsel %vm652, %v641, 0.0
    %v658 = vsel %vm652, %v642, 0.0
    %v659 = vsel %vm653, %v639, 0.0
    %v660 = vsel %vm653, %v640, 0.0
    %v661 = vsel %vm654, %v645, 0.0
    %v662 = vsel %vm654, %v646, 0.0
    %s663 = scalar_lea.vmem %s4, 14
    %v664 = vld [vmem:[%s663] sm:$0x3]
    %v666 = vlaneseq
    %v667 = vshrl.u32 %v666, 7
    %v668 = vsub.s32 0, %v667
    %v669 = vrot.slane %v664, %v668
    %v670 = vlaneseq
    %v671 = vshrl.u32 %v670, 7
    %v672 = vsub.s32 1, %v671
    %v673 = vrot.slane %v664, %v672
    %v676 = vmul.f32 %v655, %v669
    %v677 = vmul.f32 %v656, %v673
    %v678 = vmul.f32 %v657, %v669
    %v679 = vmul.f32 %v658, %v673
    %v680 = vmul.f32 %v659, %v669
    %v681 = vmul.f32 %v660, %v673
    %v682 = vmul.f32 %v661, %v669
    %v683 = vmul.f32 %v662, %v673
    %684 = vrot.lane.b32.xlu0 %v655, 16
    %v685 = vpop.permute.xlu0 %684
    %686 = vrot.lane.b32.xlu0 %v657, 16
    %v687 = vpop.permute.xlu0 %686
    %688 = vrot.lane.b32.xlu0 %v659, 16
    %v689 = vpop.permute.xlu0 %688
    %690 = vrot.lane.b32.xlu0 %v661, 16
    %v691 = vpop.permute.xlu0 %690
    %692 = vrot.lane.b32.xlu0 %v656, 16
    %v693 = vpop.permute.xlu0 %692
    %694 = vrot.lane.b32.xlu0 %v658, 16
    %v695 = vpop.permute.xlu0 %694
    %696 = vrot.lane.b32.xlu0 %v660, 16
    %v697 = vpop.permute.xlu0 %696
    %698 = vrot.lane.b32.xlu0 %v662, 16
    %v699 = vpop.permute.xlu0 %698
    %v700 = vsel %vm380, %v685, %v693
    %v701 = vsel %vm380, %v687, %v695
    %v702 = vsel %vm380, %v689, %v697
    %v703 = vsel %vm380, %v691, %v699
    %v704 = vsel %vm380, %v693, %v685
    %v705 = vsel %vm380, %v695, %v687
    %v706 = vsel %vm380, %v697, %v689
    %v707 = vsel %vm380, %v699, %v691
    %s708 = scalar_lea.vmem %s4, 12
    %v709 = vld [vmem:[%s708] sm:$0x3]
    %v711 = vlaneseq
    %v712 = vshrl.u32 %v711, 7
    %v713 = vsub.s32 0, %v712
    %v714 = vrot.slane %v709, %v713
    %v715 = vlaneseq
    %v716 = vshrl.u32 %v715, 7
    %v717 = vsub.s32 1, %v716
    %v718 = vrot.slane %v709, %v717
    %v721 = vmul.f32 %v704, %v714
    %v722 = vmul.f32 %v700, %v718
    %v723 = vmul.f32 %v705, %v714
    %v724 = vmul.f32 %v701, %v718
    %v725 = vmul.f32 %v706, %v714
    %v726 = vmul.f32 %v702, %v718
    %v727 = vmul.f32 %v707, %v714
    %v728 = vmul.f32 %v703, %v718
    %v729 = vadd.f32 %v676, %v721
    %v730 = vadd.f32 %v677, %v722
    %v731 = vadd.f32 %v678, %v723
    %v732 = vadd.f32 %v679, %v724
    %v733 = vadd.f32 %v680, %v725
    %v734 = vadd.f32 %v681, %v726
    %v735 = vadd.f32 %v682, %v727
    %v736 = vadd.f32 %v683, %v728
    %737 = vrot.lane.b32.xlu0 %v655, 112
    %v738 = vpop.permute.xlu0 %737
    %739 = vrot.lane.b32.xlu0 %v657, 112
    %v740 = vpop.permute.xlu0 %739
    %741 = vrot.lane.b32.xlu0 %v659, 112
    %v742 = vpop.permute.xlu0 %741
    %743 = vrot.lane.b32.xlu0 %v661, 112
    %v744 = vpop.permute.xlu0 %743
    %745 = vrot.lane.b32.xlu0 %v656, 112
    %v746 = vpop.permute.xlu0 %745
    %747 = vrot.lane.b32.xlu0 %v658, 112
    %v748 = vpop.permute.xlu0 %747
    %749 = vrot.lane.b32.xlu0 %v660, 112
    %v750 = vpop.permute.xlu0 %749
    %751 = vrot.lane.b32.xlu0 %v662, 112
    %v752 = vpop.permute.xlu0 %751
    %v753 = vsel %vm433, %v738, %v746
    %v754 = vsel %vm433, %v740, %v748
    %v755 = vsel %vm433, %v742, %v750
    %v756 = vsel %vm433, %v744, %v752
    %v757 = vsel %vm433, %v746, %v738
    %v758 = vsel %vm433, %v748, %v740
    %v759 = vsel %vm433, %v750, %v742
    %v760 = vsel %vm433, %v752, %v744
    %s761 = scalar_lea.vmem %s4, 16
    %v762 = vld [vmem:[%s761] sm:$0x3]
    %v764 = vlaneseq
    %v765 = vshrl.u32 %v764, 7
    %v766 = vsub.s32 0, %v765
    %v767 = vrot.slane %v762, %v766
    %v768 = vlaneseq
    %v769 = vshrl.u32 %v768, 7
    %v770 = vsub.s32 1, %v769
    %v771 = vrot.slane %v762, %v770
    %v774 = vmul.f32 %v753, %v767
    %v775 = vmul.f32 %v757, %v771
    %v776 = vmul.f32 %v754, %v767
    %v777 = vmul.f32 %v758, %v771
    %v778 = vmul.f32 %v755, %v767
    %v779 = vmul.f32 %v759, %v771
    %v780 = vmul.f32 %v756, %v767
    %v781 = vmul.f32 %v760, %v771
    %v782 = vadd.f32 %v729, %v774
    %v783 = vadd.f32 %v730, %v775
    %v784 = vadd.f32 %v731, %v776
    %v785 = vadd.f32 %v732, %v777
    %v786 = vadd.f32 %v733, %v778
    %v787 = vadd.f32 %v734, %v779
    %v788 = vadd.f32 %v735, %v780
    %v789 = vadd.f32 %v736, %v781
    %v790 = vld [vmem:[#allocation2] sm:$0xff]
    %v791 = vld [vmem:[#allocation2 + $0x8] sm:$0xff]
    %v792 = vld [vmem:[#allocation2 + $0x10] sm:$0xff]
    %v793 = vld [vmem:[#allocation2 + $0x18] sm:$0xff]
    %v794 = vld [vmem:[#allocation2 + $0x20] sm:$0xff]
    %v795 = vld [vmem:[#allocation2 + $0x28] sm:$0xff]
    %v796 = vld [vmem:[#allocation2 + $0x30] sm:$0xff]
    %v797 = vld [vmem:[#allocation2 + $0x38] sm:$0xff]
    %v798 = vadd.f32 %v790, %v782
    %v799 = vadd.f32 %v791, %v783
    %v800 = vadd.f32 %v792, %v784
    %v801 = vadd.f32 %v793, %v785
    %v802 = vadd.f32 %v794, %v786
    %v803 = vadd.f32 %v795, %v787
    %v804 = vadd.f32 %v796, %v788
    %v805 = vadd.f32 %v797, %v789
    %806 = vst [vmem:[#allocation2] sm:$0xff] %v798
    %807 = vst [vmem:[#allocation2 + $0x8] sm:$0xff] %v799
    %808 = vst [vmem:[#allocation2 + $0x10] sm:$0xff] %v800
    %809 = vst [vmem:[#allocation2 + $0x18] sm:$0xff] %v801
    %810 = vst [vmem:[#allocation2 + $0x20] sm:$0xff] %v802
    %811 = vst [vmem:[#allocation2 + $0x28] sm:$0xff] %v803
    %812 = vst [vmem:[#allocation2 + $0x30] sm:$0xff] %v804
    %813 = vst [vmem:[#allocation2 + $0x38] sm:$0xff] %v805
    %v814 = vld [vmem:[#allocation2] sm:$0xff]
    %v815 = vld [vmem:[#allocation2 + $0x8] sm:$0xff]
    %v816 = vld [vmem:[#allocation2 + $0x10] sm:$0xff]
    %v817 = vld [vmem:[#allocation2 + $0x18] sm:$0xff]
    %v818 = vld [vmem:[#allocation2 + $0x20] sm:$0xff]
    %v819 = vld [vmem:[#allocation2 + $0x28] sm:$0xff]
    %v820 = vld [vmem:[#allocation2 + $0x30] sm:$0xff]
    %v821 = vld [vmem:[#allocation2 + $0x38] sm:$0xff]
    %v822 = vld [vmem:[%s5] sm:$0x3]
    %v824 = vlaneseq
    %v825 = vshrl.u32 %v824, 7
    %v826 = vsub.s32 0, %v825
    %v827 = vrot.slane %v822, %v826
    %v828 = vlaneseq
    %v829 = vshrl.u32 %v828, 7
    %v830 = vsub.s32 1, %v829
    %v831 = vrot.slane %v822, %v830
    %v834 = vadd.f32 %v814, %v827
    %v835 = vadd.f32 %v815, %v831
    %v836 = vadd.f32 %v816, %v827
    %v837 = vadd.f32 %v817, %v831
    %v838 = vadd.f32 %v818, %v827
    %v839 = vadd.f32 %v819, %v831
    %v840 = vadd.f32 %v820, %v827
    %v841 = vadd.f32 %v821, %v831
    %vm842 = vcmp.gt.f32.partialorder %v834, 0.0
    %vm843 = vcmp.gt.f32.partialorder %v835, 0.0
    %vm844 = vcmp.gt.f32.partialorder %v836, 0.0
    %vm845 = vcmp.gt.f32.partialorder %v837, 0.0
    %vm846 = vcmp.gt.f32.partialorder %v838, 0.0
    %vm847 = vcmp.gt.f32.partialorder %v839, 0.0
    %vm848 = vcmp.gt.f32.partialorder %v840, 0.0
    %vm849 = vcmp.gt.f32.partialorder %v841, 0.0
    %v850 = vld [vmem:[%s6] sm:$0x3]
    %v852 = vlaneseq
    %v853 = vshrl.u32 %v852, 7
    %v854 = vsub.s32 0, %v853
    %v855 = vrot.slane %v850, %v854
    %v856 = vlaneseq
    %v857 = vshrl.u32 %v856, 7
    %v858 = vsub.s32 1, %v857
    %v859 = vrot.slane %v850, %v858
    %v862 = vmul.f32 %v855, %v834
    %v863 = vmul.f32 %v859, %v835
    %v864 = vmul.f32 %v855, %v836
    %v865 = vmul.f32 %v859, %v837
    %v866 = vmul.f32 %v855, %v838
    %v867 = vmul.f32 %v859, %v839
    %v868 = vmul.f32 %v855, %v840
    %v869 = vmul.f32 %v859, %v841
    %v870 = vsel %vm842, %v834, %v862
    %v871 = vsel %vm843, %v835, %v863
    %v872 = vsel %vm844, %v836, %v864
    %v873 = vsel %vm845, %v837, %v865
    %v874 = vsel %vm846, %v838, %v866
    %v875 = vsel %vm847, %v839, %v867
    %v876 = vsel %vm848, %v840, %v868
    %v877 = vsel %vm849, %v841, %v869
    %v878 = vld [vmem:[#allocation8] sm:$0xff]
    %v879 = vld [vmem:[#allocation8 + $0x8] sm:$0xff]
    %v880 = vld [vmem:[#allocation8 + $0x10] sm:$0xff]
    %v881 = vld [vmem:[#allocation8 + $0x18] sm:$0xff]
    %v882 = vld [vmem:[#allocation8 + $0x20] sm:$0xff]
    %v883 = vld [vmem:[#allocation8 + $0x28] sm:$0xff]
    %v884 = vld [vmem:[#allocation8 + $0x30] sm:$0xff]
    %v885 = vld [vmem:[#allocation8 + $0x38] sm:$0xff]
    %v886 = vld [vmem:[#allocation8 + $0x40] sm:$0xff]
    %v887 = vld [vmem:[#allocation8 + $0x48] sm:$0xff]
    %v888 = vld [vmem:[#allocation8 + $0x50] sm:$0xff]
    %v889 = vld [vmem:[#allocation8 + $0x58] sm:$0xff]
    %v890 = vld [vmem:[#allocation8 + $0x60] sm:$0xff]
    %v891 = vld [vmem:[#allocation8 + $0x68] sm:$0xff]
    %v892 = vld [vmem:[#allocation8 + $0x70] sm:$0xff]
    %v893 = vld [vmem:[#allocation8 + $0x78] sm:$0xff]
    %v894 = vld [vmem:[#allocation8 + $0x80] sm:$0xff]
    %v895 = vld [vmem:[#allocation8 + $0x88] sm:$0xff]
    %v896 = vld [vmem:[#allocation8 + $0x90] sm:$0xff]
    %v897 = vld [vmem:[#allocation8 + $0x98] sm:$0xff]
    %v898 = vld [vmem:[#allocation8 + $0xa0] sm:$0xff]
    %v899 = vld [vmem:[#allocation8 + $0xa8] sm:$0xff]
    %v900 = vld [vmem:[#allocation8 + $0xb0] sm:$0xff]
    %v901 = vld [vmem:[#allocation8 + $0xb8] sm:$0xff]
    %v902 = vld [vmem:[#allocation8 + $0xc0] sm:$0xff]
    %v903 = vld [vmem:[#allocation8 + $0xc8] sm:$0xff]
    %v904 = vld [vmem:[#allocation8 + $0xd0] sm:$0xff]
    %v905 = vld [vmem:[#allocation8 + $0xd8] sm:$0xff]
    %v906 = vld [vmem:[#allocation8 + $0xe0] sm:$0xff]
    %v907 = vld [vmem:[#allocation8 + $0xe8] sm:$0xff]
    %v908 = vld [vmem:[#allocation8 + $0xf0] sm:$0xff]
    %v909 = vld [vmem:[#allocation8 + $0xf8] sm:$0xff]
    %910 = vmatprep.subr.mxu0 0.0
    %911 = vmatpush1.msra.mxu0 %v878
    %912 = vmatprep.subr.mxu0 0.0
    %913 = vmatpush1.msra.mxu0 %v879
    %914 = vmatprep.subr.mxu0 0.0
    %915 = vmatpush1.msra.mxu0 %v880
    %916 = vmatprep.subr.mxu0 0.0
    %917 = vmatpush1.msra.mxu0 %v881
    %918 = vmatprep.subr.mxu0 0.0
    %919 = vmatpush1.msra.mxu0 %v882
    %920 = vmatprep.subr.mxu0 0.0
    %921 = vmatpush1.msra.mxu0 %v883
    %922 = vmatprep.subr.mxu0 0.0
    %923 = vmatpush1.msra.mxu0 %v884
    %924 = vmatprep.subr.mxu0 0.0
    %925 = vmatpush1.msra.mxu0 %v885
    %926 = vmatprep.subr.mxu0 0.0
    %927 = vmatpush1.msra.mxu0 %v886
    %928 = vmatprep.subr.mxu0 0.0
    %929 = vmatpush1.msra.mxu0 %v887
    %930 = vmatprep.subr.mxu0 0.0
    %931 = vmatpush1.msra.mxu0 %v888
    %932 = vmatprep.subr.mxu0 0.0
    %933 = vmatpush1.msra.mxu0 %v889
    %934 = vmatprep.subr.mxu0 0.0
    %935 = vmatpush1.msra.mxu0 %v890
    %936 = vmatprep.subr.mxu0 0.0
    %937 = vmatpush1.msra.mxu0 %v891
    %938 = vmatprep.subr.mxu0 0.0
    %939 = vmatpush1.msra.mxu0 %v892
    %940 = vmatprep.subr.mxu0 0.0
    %941 = vmatpush1.msra.mxu0 %v893
    %942 = vmatprep.subr.mxu0 0.0
    %943 = vmatpush1.msra.mxu0 %v894
    %944 = vmatprep.subr.mxu0 0.0
    %945 = vmatpush1.msra.mxu0 %v895
    %946 = vmatprep.subr.mxu0 0.0
    %947 = vmatpush1.msra.mxu0 %v896
    %948 = vmatprep.subr.mxu0 0.0
    %949 = vmatpush1.msra.mxu0 %v897
    %950 = vmatprep.subr.mxu0 0.0
    %951 = vmatpush1.msra.mxu0 %v898
    %952 = vmatprep.subr.mxu0 0.0
    %953 = vmatpush1.msra.mxu0 %v899
    %954 = vmatprep.subr.mxu0 0.0
    %955 = vmatpush1.msra.mxu0 %v900
    %956 = vmatprep.subr.mxu0 0.0
    %957 = vmatpush1.msra.mxu0 %v901
    %958 = vmatprep.subr.mxu0 0.0
    %959 = vmatpush1.msra.mxu0 %v902
    %960 = vmatprep.subr.mxu0 0.0
    %961 = vmatpush1.msra.mxu0 %v903
    %962 = vmatprep.subr.mxu0 0.0
    %963 = vmatpush1.msra.mxu0 %v904
    %964 = vmatprep.subr.mxu0 0.0
    %965 = vmatpush1.msra.mxu0 %v905
    %966 = vmatprep.subr.mxu0 0.0
    %967 = vmatpush1.msra.mxu0 %v906
    %968 = vmatprep.subr.mxu0 0.0
    %969 = vmatpush1.msra.mxu0 %v907
    %970 = vmatprep.subr.mxu0 0.0
    %971 = vmatpush1.msra.mxu0 %v908
    %972 = vmatprep.subr.mxu0 0.0
    %973 = vmatpush1.msra.mxu0 %v909
    %974 = vmatprep.mubr.f32.mxu0 %v871
    %975 = vmatmul.mubr.f32.gmra.mrb[0].mxu0 %v870
    %v976 = vpop.f32.mrb[0].mxu0
    %v977 = vadd.f32 0.0, %v976
    %v978 = vpop.f32.mrb[0].mxu0
    %979 = vmatprep.mubr.f32.mxu0 %v873
    %980 = vmatmul.mubr.f32.gmra.mrb[0].mxu0 %v872
    %v981 = vpop.f32.mrb[0].mxu0
    %v982 = vadd.f32 0.0, %v981
    %v983 = vpop.f32.mrb[0].mxu0
    %984 = vmatprep.mubr.f32.mxu0 %v875
    %985 = vmatmul.mubr.f32.gmra.mrb[0].mxu0 %v874
    %v986 = vpop.f32.mrb[0].mxu0
    %v987 = vadd.f32 0.0, %v986
    %v988 = vpop.f32.mrb[0].mxu0
    %989 = vmatprep.mubr.f32.mxu0 %v877
    %990 = vmatmul.mubr.f32.gmra.mrb[0].mxu0 %v876
    %v991 = vpop.f32.mrb[0].mxu0
    %v992 = vadd.f32 0.0, %v991
    %v993 = vpop.f32.mrb[0].mxu0
    %994 = vdwg.mxu0
    %v995 = vadd.f32 %v135, %v977
    %v996 = vadd.f32 %v136, %v982
    %v997 = vadd.f32 %v137, %v987
    %v998 = vadd.f32 %v138, %v992
    %v999 = vld [vmem:[%s8] sm:$0x1]
    %v1001 = vlaneseq
    %v1002 = vshrl.u32 %v1001, 7
    %v1003 = vsub.s32 0, %v1002
    %v1004 = vrot.slane %v999, %v1003
    %v1006 = vadd.f32 %v995, %v1004
    %v1007 = vadd.f32 %v996, %v1004
    %v1008 = vadd.f32 %v997, %v1004
    %v1009 = vadd.f32 %v998, %v1004
    %s1010 = scalar_lea.vmem [#allocation6], 256
    %v1011 = vld [vmem:[%s1010] sm:$0xff]
    %v1012 = vld [vmem:[%s1010 + $0x8] sm:$0xff]
    %v1013 = vld [vmem:[%s1010 + $0x10] sm:$0xff]
    %v1014 = vld [vmem:[%s1010 + $0x18] sm:$0xff]
    %v1015 = vld [vmem:[%s1010 + $0x20] sm:$0xff]
    %v1016 = vld [vmem:[%s1010 + $0x28] sm:$0xff]
    %v1017 = vld [vmem:[%s1010 + $0x30] sm:$0xff]
    %v1018 = vld [vmem:[%s1010 + $0x38] sm:$0xff]
    %v1019 = vld [vmem:[%s1010 + $0x40] sm:$0xff]
    %v1020 = vld [vmem:[%s1010 + $0x48] sm:$0xff]
    %v1021 = vld [vmem:[%s1010 + $0x50] sm:$0xff]
    %v1022 = vld [vmem:[%s1010 + $0x58] sm:$0xff]
    %v1023 = vld [vmem:[%s1010 + $0x60] sm:$0xff]
    %v1024 = vld [vmem:[%s1010 + $0x68] sm:$0xff]
    %v1025 = vld [vmem:[%s1010 + $0x70] sm:$0xff]
    %v1026 = vld [vmem:[%s1010 + $0x78] sm:$0xff]
    %v1027 = vld [vmem:[%s1010 + $0x80] sm:$0xff]
    %v1028 = vld [vmem:[%s1010 + $0x88] sm:$0xff]
    %v1029 = vld [vmem:[%s1010 + $0x90] sm:$0xff]
    %v1030 = vld [vmem:[%s1010 + $0x98] sm:$0xff]
    %v1031 = vld [vmem:[%s1010 + $0xa0] sm:$0xff]
    %v1032 = vld [vmem:[%s1010 + $0xa8] sm:$0xff]
    %v1033 = vld [vmem:[%s1010 + $0xb0] sm:$0xff]
    %v1034 = vld [vmem:[%s1010 + $0xb8] sm:$0xff]
    %v1035 = vld [vmem:[%s1010 + $0xc0] sm:$0xff]
    %v1036 = vld [vmem:[%s1010 + $0xc8] sm:$0xff]
    %v1037 = vld [vmem:[%s1010 + $0xd0] sm:$0xff]
    %v1038 = vld [vmem:[%s1010 + $0xd8] sm:$0xff]
    %v1039 = vld [vmem:[%s1010 + $0xe0] sm:$0xff]
    %v1040 = vld [vmem:[%s1010 + $0xe8] sm:$0xff]
    %v1041 = vld [vmem:[%s1010 + $0xf0] sm:$0xff]
    %v1042 = vld [vmem:[%s1010 + $0xf8] sm:$0xff]
    %s1043 = scalar_lea.vmem %s2, 2
    %v1044 = vld [vmem:[%s1043] sm:$0x3]
    %v1046 = vlaneseq
    %v1047 = vshrl.u32 %v1046, 7
    %v1048 = vsub.s32 0, %v1047
    %v1049 = vrot.slane %v1044, %v1048
    %v1050 = vlaneseq
    %v1051 = vshrl.u32 %v1050, 7
    %v1052 = vsub.s32 1, %v1051
    %v1053 = vrot.slane %v1044, %v1052
    %1056 = vmatprep.subr.mxu0 %v1012
    %1057 = vmatpush1.msra.mxu0 %v1011
    %1058 = vmatprep.subr.mxu0 %v1014
    %1059 = vmatpush1.msra.mxu0 %v1013
    %1060 = vmatprep.subr.mxu0 %v1016
    %1061 = vmatpush1.msra.mxu0 %v1015
    %1062 = vmatprep.subr.mxu0 %v1018
    %1063 = vmatpush1.msra.mxu0 %v1017
    %1064 = vmatprep.subr.mxu0 %v1020
    %1065 = vmatpush1.msra.mxu0 %v1019
    %1066 = vmatprep.subr.mxu0 %v1022
    %1067 = vmatpush1.msra.mxu0 %v1021
    %1068 = vmatprep.subr.mxu0 %v1024
    %1069 = vmatpush1.msra.mxu0 %v1023
    %1070 = vmatprep.subr.mxu0 %v1026
    %1071 = vmatpush1.msra.mxu0 %v1025
    %1072 = vmatprep.subr.mxu0 %v1028
    %1073 = vmatpush1.msra.mxu0 %v1027
    %1074 = vmatprep.subr.mxu0 %v1030
    %1075 = vmatpush1.msra.mxu0 %v1029
    %1076 = vmatprep.subr.mxu0 %v1032
    %1077 = vmatpush1.msra.mxu0 %v1031
    %1078 = vmatprep.subr.mxu0 %v1034
    %1079 = vmatpush1.msra.mxu0 %v1033
    %1080 = vmatprep.subr.mxu0 %v1036
    %1081 = vmatpush1.msra.mxu0 %v1035
    %1082 = vmatprep.subr.mxu0 %v1038
    %1083 = vmatpush1.msra.mxu0 %v1037
    %1084 = vmatprep.subr.mxu0 %v1040
    %1085 = vmatpush1.msra.mxu0 %v1039
    %1086 = vmatprep.subr.mxu0 %v1042
    %1087 = vmatpush1.msra.mxu0 %v1041
    %1088 = vmatprep.subr.mxu0 0.0
    %1089 = vmatpush1.msra.mxu0 0.0
    %1090 = vmatprep.subr.mxu0 0.0
    %1091 = vmatpush1.msra.mxu0 0.0
    %1092 = vmatprep.subr.mxu0 0.0
    %1093 = vmatpush1.msra.mxu0 0.0
    %1094 = vmatprep.subr.mxu0 0.0
    %1095 = vmatpush1.msra.mxu0 0.0
    %1096 = vmatprep.subr.mxu0 0.0
    %1097 = vmatpush1.msra.mxu0 0.0
    %1098 = vmatprep.subr.mxu0 0.0
    %1099 = vmatpush1.msra.mxu0 0.0
    %1100 = vmatprep.subr.mxu0 0.0
    %1101 = vmatpush1.msra.mxu0 0.0
    %1102 = vmatprep.subr.mxu0 0.0
    %1103 = vmatpush1.msra.mxu0 0.0
    %1104 = vmatprep.subr.mxu0 0.0
    %1105 = vmatpush1.msra.mxu0 0.0
    %1106 = vmatprep.subr.mxu0 0.0
    %1107 = vmatpush1.msra.mxu0 0.0
    %1108 = vmatprep.subr.mxu0 0.0
    %1109 = vmatpush1.msra.mxu0 0.0
    %1110 = vmatprep.subr.mxu0 0.0
    %1111 = vmatpush1.msra.mxu0 0.0
    %1112 = vmatprep.subr.mxu0 0.0
    %1113 = vmatpush1.msra.mxu0 0.0
    %1114 = vmatprep.subr.mxu0 0.0
    %1115 = vmatpush1.msra.mxu0 0.0
    %1116 = vmatprep.subr.mxu0 0.0
    %1117 = vmatpush1.msra.mxu0 0.0
    %1118 = vmatprep.subr.mxu0 0.0
    %1119 = vmatpush1.msra.mxu0 0.0
    %1120 = vmatprep.mubr.f32.mxu0 0.0
    %1121 = vmatmul.mubr.f32.gmra.mrb[0].mxu0 %v1006
    %v1122 = vpop.f32.mrb[0].mxu0
    %v1123 = vadd.f32 %v1049, %v1122
    %v1124 = vpop.f32.mrb[0].mxu0
    %v1125 = vadd.f32 %v1053, %v1124
    %1126 = vmatprep.mubr.f32.mxu0 0.0
    %1127 = vmatmul.mubr.f32.gmra.mrb[0].mxu0 %v1007
    %v1128 = vpop.f32.mrb[0].mxu0
    %v1129 = vadd.f32 %v1049, %v1128
    %v1130 = vpop.f32.mrb[0].mxu0
    %v1131 = vadd.f32 %v1053, %v1130
    %1132 = vmatprep.mubr.f32.mxu0 0.0
    %1133 = vmatmul.mubr.f32.gmra.mrb[0].mxu0 %v1008
    %v1134 = vpop.f32.mrb[0].mxu0
    %v1135 = vadd.f32 %v1049, %v1134
    %v1136 = vpop.f32.mrb[0].mxu0
    %v1137 = vadd.f32 %v1053, %v1136
    %1138 = vmatprep.mubr.f32.mxu0 0.0
    %1139 = vmatmul.mubr.f32.gmra.mrb[0].mxu0 %v1009
    %v1140 = vpop.f32.mrb[0].mxu0
    %v1141 = vadd.f32 %v1049, %v1140
    %v1142 = vpop.f32.mrb[0].mxu0
    %v1143 = vadd.f32 %v1053, %v1142
    %1144 = vdwg.mxu0
    %vm1145 = vcmp.gt.f32.partialorder %v1123, 0.0
    %vm1146 = vcmp.gt.f32.partialorder %v1125, 0.0
    %vm1147 = vcmp.gt.f32.partialorder %v1129, 0.0
    %vm1148 = vcmp.gt.f32.partialorder %v1131, 0.0
    %vm1149 = vcmp.gt.f32.partialorder %v1135, 0.0
    %vm1150 = vcmp.gt.f32.partialorder %v1137, 0.0
    %vm1151 = vcmp.gt.f32.partialorder %v1141, 0.0
    %vm1152 = vcmp.gt.f32.partialorder %v1143, 0.0
    %s1153 = scalar_lea.vmem %s3, 2
    %v1154 = vld [vmem:[%s1153] sm:$0x3]
    %v1156 = vlaneseq
    %v1157 = vshrl.u32 %v1156, 7
    %v1158 = vsub.s32 0, %v1157
    %v1159 = vrot.slane %v1154, %v1158
    %v1160 = vlaneseq
    %v1161 = vshrl.u32 %v1160, 7
    %v1162 = vsub.s32 1, %v1161
    %v1163 = vrot.slane %v1154, %v1162
    %v1166 = vmul.f32 %v1159, %v1123
    %v1167 = vmul.f32 %v1163, %v1125
    %v1168 = vmul.f32 %v1159, %v1129
    %v1169 = vmul.f32 %v1163, %v1131
    %v1170 = vmul.f32 %v1159, %v1135
    %v1171 = vmul.f32 %v1163, %v1137
    %v1172 = vmul.f32 %v1159, %v1141
    %v1173 = vmul.f32 %v1163, %v1143
    %v1174 = vsel %vm1145, %v1123, %v1166
    %v1175 = vsel %vm1146, %v1125, %v1167
    %v1176 = vsel %vm1147, %v1129, %v1168
    %v1177 = vsel %vm1148, %v1131, %v1169
    %v1178 = vsel %vm1149, %v1135, %v1170
    %v1179 = vsel %vm1150, %v1137, %v1171
    %v1180 = vsel %vm1151, %v1141, %v1172
    %v1181 = vsel %vm1152, %v1143, %v1173
    %v1182 = vrot.slane %v1174, 7
    %v1183 = vrot.slane %v1175, 7
    %v1184 = vrot.slane %v1176, 7
    %v1185 = vrot.slane %v1177, 7
    %v1186 = vrot.slane %v1178, 7
    %v1187 = vrot.slane %v1179, 7
    %v1188 = vrot.slane %v1180, 7
    %v1189 = vrot.slane %v1181, 7
    %v1190 = vsel %vm316, %v1186, %v1188
    %v1191 = vsel %vm316, %v1187, %v1189
    %v1192 = vsel %vm316, %v1184, %v1186
    %v1193 = vsel %vm316, %v1185, %v1187
    %v1194 = vsel %vm316, %v1182, %v1184
    %v1195 = vsel %vm316, %v1183, %v1185
    %v1196 = vsel %vm316, %v1188, %v1182
    %v1197 = vsel %vm316, %v1189, %v1183
    %v1198 = vsel %vm329, %v1196, 0.0
    %v1199 = vsel %vm329, %v1197, 0.0
    %v1200 = vsel %vm330, %v1194, 0.0
    %v1201 = vsel %vm330, %v1195, 0.0
    %v1202 = vsel %vm331, %v1192, 0.0
    %v1203 = vsel %vm331, %v1193, 0.0
    %v1204 = vsel %vm332, %v1190, 0.0
    %v1205 = vsel %vm332, %v1191, 0.0
    %s1206 = scalar_lea.vmem %s4, 20
    %v1207 = vld [vmem:[%s1206] sm:$0x3]
    %v1209 = vlaneseq
    %v1210 = vshrl.u32 %v1209, 7
    %v1211 = vsub.s32 0, %v1210
    %v1212 = vrot.slane %v1207, %v1211
    %v1213 = vlaneseq
    %v1214 = vshrl.u32 %v1213, 7
    %v1215 = vsub.s32 1, %v1214
    %v1216 = vrot.slane %v1207, %v1215
    %v1219 = vmul.f32 %v1198, %v1212
    %v1220 = vmul.f32 %v1199, %v1216
    %v1221 = vmul.f32 %v1200, %v1212
    %v1222 = vmul.f32 %v1201, %v1216
    %v1223 = vmul.f32 %v1202, %v1212
    %v1224 = vmul.f32 %v1203, %v1216
    %v1225 = vmul.f32 %v1204, %v1212
    %v1226 = vmul.f32 %v1205, %v1216
    %1227 = vrot.lane.b32.xlu0 %v1198, 16
    %v1228 = vpop.permute.xlu0 %1227
    %1229 = vrot.lane.b32.xlu0 %v1200, 16
    %v1230 = vpop.permute.xlu0 %1229
    %1231 = vrot.lane.b32.xlu0 %v1202, 16
    %v1232 = vpop.permute.xlu0 %1231
    %1233 = vrot.lane.b32.xlu0 %v1204, 16
    %v1234 = vpop.permute.xlu0 %1233
    %1235 = vrot.lane.b32.xlu0 %v1199, 16
    %v1236 = vpop.permute.xlu0 %1235
    %1237 = vrot.lane.b32.xlu0 %v1201, 16
    %v1238 = vpop.permute.xlu0 %1237
    %1239 = vrot.lane.b32.xlu0 %v1203, 16
    %v1240 = vpop.permute.xlu0 %1239
    %1241 = vrot.lane.b32.xlu0 %v1205, 16
    %v1242 = vpop.permute.xlu0 %1241
    %v1243 = vsel %vm380, %v1228, %v1236
    %v1244 = vsel %vm380, %v1230, %v1238
    %v1245 = vsel %vm380, %v1232, %v1240
    %v1246 = vsel %vm380, %v1234, %v1242
    %v1247 = vsel %vm380, %v1236, %v1228
    %v1248 = vsel %vm380, %v1238, %v1230
    %v1249 = vsel %vm380, %v1240, %v1232
    %v1250 = vsel %vm380, %v1242, %v1234
    %s1251 = scalar_lea.vmem %s4, 18
    %v1252 = vld [vmem:[%s1251] sm:$0x3]
    %v1254 = vlaneseq
    %v1255 = vshrl.u32 %v1254, 7
    %v1256 = vsub.s32 0, %v1255
    %v1257 = vrot.slane %v1252, %v1256
    %v1258 = vlaneseq
    %v1259 = vshrl.u32 %v1258, 7
    %v1260 = vsub.s32 1, %v1259
    %v1261 = vrot.slane %v1252, %v1260
    %v1264 = vmul.f32 %v1247, %v1257
    %v1265 = vmul.f32 %v1243, %v1261
    %v1266 = vmul.f32 %v1248, %v1257
    %v1267 = vmul.f32 %v1244, %v1261
    %v1268 = vmul.f32 %v1249, %v1257
    %v1269 = vmul.f32 %v1245, %v1261
    %v1270 = vmul.f32 %v1250, %v1257
    %v1271 = vmul.f32 %v1246, %v1261
    %v1272 = vadd.f32 %v1219, %v1264
    %v1273 = vadd.f32 %v1220, %v1265
    %v1274 = vadd.f32 %v1221, %v1266
    %v1275 = vadd.f32 %v1222, %v1267
    %v1276 = vadd.f32 %v1223, %v1268
    %v1277 = vadd.f32 %v1224, %v1269
    %v1278 = vadd.f32 %v1225, %v1270
    %v1279 = vadd.f32 %v1226, %v1271
    %1280 = vrot.lane.b32.xlu0 %v1198, 112
    %v1281 = vpop.permute.xlu0 %1280
    %1282 = vrot.lane.b32.xlu0 %v1200, 112
    %v1283 = vpop.permute.xlu0 %1282
    %1284 = vrot.lane.b32.xlu0 %v1202, 112
    %v1285 = vpop.permute.xlu0 %1284
    %1286 = vrot.lane.b32.xlu0 %v1204, 112
    %v1287 = vpop.permute.xlu0 %1286
    %1288 = vrot.lane.b32.xlu0 %v1199, 112
    %v1289 = vpop.permute.xlu0 %1288
    %1290 = vrot.lane.b32.xlu0 %v1201, 112
    %v1291 = vpop.permute.xlu0 %1290
    %1292 = vrot.lane.b32.xlu0 %v1203, 112
    %v1293 = vpop.permute.xlu0 %1292
    %1294 = vrot.lane.b32.xlu0 %v1205, 112
    %v1295 = vpop.permute.xlu0 %1294
    %v1296 = vsel %vm433, %v1281, %v1289
    %v1297 = vsel %vm433, %v1283, %v1291
    %v1298 = vsel %vm433, %v1285, %v1293
    %v1299 = vsel %vm433, %v1287, %v1295
    %v1300 = vsel %vm433, %v1289, %v1281
    %v1301 = vsel %vm433, %v1291, %v1283
    %v1302 = vsel %vm433, %v1293, %v1285
    %v1303 = vsel %vm433, %v1295, %v1287
    %s1304 = scalar_lea.vmem %s4, 22
    %v1305 = vld [vmem:[%s1304] sm:$0x3]
    %v1307 = vlaneseq
    %v1308 = vshrl.u32 %v1307, 7
    %v1309 = vsub.s32 0, %v1308
    %v1310 = vrot.slane %v1305, %v1309
    %v1311 = vlaneseq
    %v1312 = vshrl.u32 %v1311, 7
    %v1313 = vsub.s32 1, %v1312
    %v1314 = vrot.slane %v1305, %v1313
    %v1317 = vmul.f32 %v1296, %v1310
    %v1318 = vmul.f32 %v1300, %v1314
    %v1319 = vmul.f32 %v1297, %v1310
    %v1320 = vmul.f32 %v1301, %v1314
    %v1321 = vmul.f32 %v1298, %v1310
    %v1322 = vmul.f32 %v1302, %v1314
    %v1323 = vmul.f32 %v1299, %v1310
    %v1324 = vmul.f32 %v1303, %v1314
    %v1325 = vadd.f32 %v1272, %v1317
    %v1326 = vadd.f32 %v1273, %v1318
    %v1327 = vadd.f32 %v1274, %v1319
    %v1328 = vadd.f32 %v1275, %v1320
    %v1329 = vadd.f32 %v1276, %v1321
    %v1330 = vadd.f32 %v1277, %v1322
    %v1331 = vadd.f32 %v1278, %v1323
    %v1332 = vadd.f32 %v1279, %v1324
    %1333 = vst [vmem:[#allocation2] sm:$0xff] %v1325
    %1334 = vst [vmem:[#allocation2 + $0x8] sm:$0xff] %v1326
    %1335 = vst [vmem:[#allocation2 + $0x10] sm:$0xff] %v1327
    %1336 = vst [vmem:[#allocation2 + $0x18] sm:$0xff] %v1328
    %1337 = vst [vmem:[#allocation2 + $0x20] sm:$0xff] %v1329
    %1338 = vst [vmem:[#allocation2 + $0x28] sm:$0xff] %v1330
    %1339 = vst [vmem:[#allocation2 + $0x30] sm:$0xff] %v1331
    %1340 = vst [vmem:[#allocation2 + $0x38] sm:$0xff] %v1332
    %s1341 = scalar_lea.vmem %s4, 26
    %v1342 = vld [vmem:[%s1341] sm:$0x3]
    %v1344 = vlaneseq
    %v1345 = vshrl.u32 %v1344, 7
    %v1346 = vsub.s32 0, %v1345
    %v1347 = vrot.slane %v1342, %v1346
    %v1348 = vlaneseq
    %v1349 = vshrl.u32 %v1348, 7
    %v1350 = vsub.s32 1, %v1349
    %v1351 = vrot.slane %v1342, %v1350
    %v1354 = vmul.f32 %v1174, %v1347
    %v1355 = vmul.f32 %v1175, %v1351
    %v1356 = vmul.f32 %v1176, %v1347
    %v1357 = vmul.f32 %v1177, %v1351
    %v1358 = vmul.f32 %v1178, %v1347
    %v1359 = vmul.f32 %v1179, %v1351
    %v1360 = vmul.f32 %v1180, %v1347
    %v1361 = vmul.f32 %v1181, %v1351
    %1362 = vrot.lane.b32.xlu0 %v1174, 16
    %v1363 = vpop.permute.xlu0 %1362
    %1364 = vrot.lane.b32.xlu0 %v1176, 16
    %v1365 = vpop.permute.xlu0 %1364
    %1366 = vrot.lane.b32.xlu0 %v1178, 16
    %v1367 = vpop.permute.xlu0 %1366
    %1368 = vrot.lane.b32.xlu0 %v1180, 16
    %v1369 = vpop.permute.xlu0 %1368
    %1370 = vrot.lane.b32.xlu0 %v1175, 16
    %v1371 = vpop.permute.xlu0 %1370
    %1372 = vrot.lane.b32.xlu0 %v1177, 16
    %v1373 = vpop.permute.xlu0 %1372
    %1374 = vrot.lane.b32.xlu0 %v1179, 16
    %v1375 = vpop.permute.xlu0 %1374
    %1376 = vrot.lane.b32.xlu0 %v1181, 16
    %v1377 = vpop.permute.xlu0 %1376
    %v1378 = vsel %vm380, %v1363, %v1371
    %v1379 = vsel %vm380, %v1365, %v1373
    %v1380 = vsel %vm380, %v1367, %v1375
    %v1381 = vsel %vm380, %v1369, %v1377
    %v1382 = vsel %vm380, %v1371, %v1363
    %v1383 = vsel %vm380, %v1373, %v1365
    %v1384 = vsel %vm380, %v1375, %v1367
    %v1385 = vsel %vm380, %v1377, %v1369
    %s1386 = scalar_lea.vmem %s4, 24
    %v1387 = vld [vmem:[%s1386] sm:$0x3]
    %v1389 = vlaneseq
    %v1390 = vshrl.u32 %v1389, 7
    %v1391 = vsub.s32 0, %v1390
    %v1392 = vrot.slane %v1387, %v1391
    %v1393 = vlaneseq
    %v1394 = vshrl.u32 %v1393, 7
    %v1395 = vsub.s32 1, %v1394
    %v1396 = vrot.slane %v1387, %v1395
    %v1399 = vmul.f32 %v1382, %v1392
    %v1400 = vmul.f32 %v1378, %v1396
    %v1401 = vmul.f32 %v1383, %v1392
    %v1402 = vmul.f32 %v1379, %v1396
    %v1403 = vmul.f32 %v1384, %v1392
    %v1404 = vmul.f32 %v1380, %v1396
    %v1405 = vmul.f32 %v1385, %v1392
    %v1406 = vmul.f32 %v1381, %v1396
    %v1407 = vadd.f32 %v1354, %v1399
    %v1408 = vadd.f32 %v1355, %v1400
    %v1409 = vadd.f32 %v1356, %v1401
    %v1410 = vadd.f32 %v1357, %v1402
    %v1411 = vadd.f32 %v1358, %v1403
    %v1412 = vadd.f32 %v1359, %v1404
    %v1413 = vadd.f32 %v1360, %v1405
    %v1414 = vadd.f32 %v1361, %v1406
    %1415 = vrot.lane.b32.xlu0 %v1174, 112
    %v1416 = vpop.permute.xlu0 %1415
    %1417 = vrot.lane.b32.xlu0 %v1176, 112
    %v1418 = vpop.permute.xlu0 %1417
    %1419 = vrot.lane.b32.xlu0 %v1178, 112
    %v1420 = vpop.permute.xlu0 %1419
    %1421 = vrot.lane.b32.xlu0 %v1180, 112
    %v1422 = vpop.permute.xlu0 %1421
    %1423 = vrot.lane.b32.xlu0 %v1175, 112
    %v1424 = vpop.permute.xlu0 %1423
    %1425 = vrot.lane.b32.xlu0 %v1177, 112
    %v1426 = vpop.permute.xlu0 %1425
    %1427 = vrot.lane.b32.xlu0 %v1179, 112
    %v1428 = vpop.permute.xlu0 %1427
    %1429 = vrot.lane.b32.xlu0 %v1181, 112
    %v1430 = vpop.permute.xlu0 %1429
    %v1431 = vsel %vm433, %v1416, %v1424
    %v1432 = vsel %vm433, %v1418, %v1426
    %v1433 = vsel %vm433, %v1420, %v1428
    %v1434 = vsel %vm433, %v1422, %v1430
    %v1435 = vsel %vm433, %v1424, %v1416
    %v1436 = vsel %vm433, %v1426, %v1418
    %v1437 = vsel %vm433, %v1428, %v1420
    %v1438 = vsel %vm433, %v1430, %v1422
    %s1439 = scalar_lea.vmem %s4, 28
    %v1440 = vld [vmem:[%s1439] sm:$0x3]
    %v1442 = vlaneseq
    %v1443 = vshrl.u32 %v1442, 7
    %v1444 = vsub.s32 0, %v1443
    %v1445 = vrot.slane %v1440, %v1444
    %v1446 = vlaneseq
    %v1447 = vshrl.u32 %v1446, 7
    %v1448 = vsub.s32 1, %v1447
    %v1449 = vrot.slane %v1440, %v1448
    %v1452 = vmul.f32 %v1431, %v1445
    %v1453 = vmul.f32 %v1435, %v1449
    %v1454 = vmul.f32 %v1432, %v1445
    %v1455 = vmul.f32 %v1436, %v1449
    %v1456 = vmul.f32 %v1433, %v1445
    %v1457 = vmul.f32 %v1437, %v1449
    %v1458 = vmul.f32 %v1434, %v1445
    %v1459 = vmul.f32 %v1438, %v1449
    %v1460 = vadd.f32 %v1407, %v1452
    %v1461 = vadd.f32 %v1408, %v1453
    %v1462 = vadd.f32 %v1409, %v1454
    %v1463 = vadd.f32 %v1410, %v1455
    %v1464 = vadd.f32 %v1411, %v1456
    %v1465 = vadd.f32 %v1412, %v1457
    %v1466 = vadd.f32 %v1413, %v1458
    %v1467 = vadd.f32 %v1414, %v1459
    %v1468 = vld [vmem:[#allocation2] sm:$0xff]
    %v1469 = vld [vmem:[#allocation2 + $0x8] sm:$0xff]
    %v1470 = vld [vmem:[#allocation2 + $0x10] sm:$0xff]
    %v1471 = vld [vmem:[#allocation2 + $0x18] sm:$0xff]
    %v1472 = vld [vmem:[#allocation2 + $0x20] sm:$0xff]
    %v1473 = vld [vmem:[#allocation2 + $0x28] sm:$0xff]
    %v1474 = vld [vmem:[#allocation2 + $0x30] sm:$0xff]
    %v1475 = vld [vmem:[#allocation2 + $0x38] sm:$0xff]
    %v1476 = vadd.f32 %v1468, %v1460
    %v1477 = vadd.f32 %v1469, %v1461
    %v1478 = vadd.f32 %v1470, %v1462
    %v1479 = vadd.f32 %v1471, %v1463
    %v1480 = vadd.f32 %v1472, %v1464
    %v1481 = vadd.f32 %v1473, %v1465
    %v1482 = vadd.f32 %v1474, %v1466
    %v1483 = vadd.f32 %v1475, %v1467
    %1484 = vst [vmem:[#allocation2] sm:$0xff] %v1476
    %1485 = vst [vmem:[#allocation2 + $0x8] sm:$0xff] %v1477
    %1486 = vst [vmem:[#allocation2 + $0x10] sm:$0xff] %v1478
    %1487 = vst [vmem:[#allocation2 + $0x18] sm:$0xff] %v1479
    %1488 = vst [vmem:[#allocation2 + $0x20] sm:$0xff] %v1480
    %1489 = vst [vmem:[#allocation2 + $0x28] sm:$0xff] %v1481
    %1490 = vst [vmem:[#allocation2 + $0x30] sm:$0xff] %v1482
    %1491 = vst [vmem:[#allocation2 + $0x38] sm:$0xff] %v1483
    %v1492 = vrot.slane %v1174, 1
    %v1493 = vrot.slane %v1175, 1
    %v1494 = vrot.slane %v1176, 1
    %v1495 = vrot.slane %v1177, 1
    %v1496 = vrot.slane %v1178, 1
    %v1497 = vrot.slane %v1179, 1
    %v1498 = vrot.slane %v1180, 1
    %v1499 = vrot.slane %v1181, 1
    %v1500 = vsel %vm638, %v1496, %v1498
    %v1501 = vsel %vm638, %v1497, %v1499
    %v1502 = vsel %vm638, %v1494, %v1496
    %v1503 = vsel %vm638, %v1495, %v1497
    %v1504 = vsel %vm638, %v1492, %v1494
    %v1505 = vsel %vm638, %v1493, %v1495
    %v1506 = vsel %vm638, %v1498, %v1492
    %v1507 = vsel %vm638, %v1499, %v1493
    %v1508 = vsel %vm651, %v1504, 0.0
    %v1509 = vsel %vm651, %v1505, 0.0
    %v1510 = vsel %vm652, %v1502, 0.0
    %v1511 = vsel %vm652, %v1503, 0.0
    %v1512 = vsel %vm653, %v1500, 0.0
    %v1513 = vsel %vm653, %v1501, 0.0
    %v1514 = vsel %vm654, %v1506, 0.0
    %v1515 = vsel %vm654, %v1507, 0.0
    %s1516 = scalar_lea.vmem %s4, 32
    %v1517 = vld [vmem:[%s1516] sm:$0x3]
    %v1519 = vlaneseq
    %v1520 = vshrl.u32 %v1519, 7
    %v1521 = vsub.s32 0, %v1520
    %v1522 = vrot.slane %v1517, %v1521
    %v1523 = vlaneseq
    %v1524 = vshrl.u32 %v1523, 7
    %v1525 = vsub.s32 1, %v1524
    %v1526 = vrot.slane %v1517, %v1525
    %v1529 = vmul.f32 %v1508, %v1522
    %v1530 = vmul.f32 %v1509, %v1526
    %v1531 = vmul.f32 %v1510, %v1522
    %v1532 = vmul.f32 %v1511, %v1526
    %v1533 = vmul.f32 %v1512, %v1522
    %v1534 = vmul.f32 %v1513, %v1526
    %v1535 = vmul.f32 %v1514, %v1522
    %v1536 = vmul.f32 %v1515, %v1526
    %1537 = vrot.lane.b32.xlu0 %v1508, 16
    %v1538 = vpop.permute.xlu0 %1537
    %1539 = vrot.lane.b32.xlu0 %v1510, 16
    %v1540 = vpop.permute.xlu0 %1539
    %1541 = vrot.lane.b32.xlu0 %v1512, 16
    %v1542 = vpop.permute.xlu0 %1541
    %1543 = vrot.lane.b32.xlu0 %v1514, 16
    %v1544 = vpop.permute.xlu0 %1543
    %1545 = vrot.lane.b32.xlu0 %v1509, 16
    %v1546 = vpop.permute.xlu0 %1545
    %1547 = vrot.lane.b32.xlu0 %v1511, 16
    %v1548 = vpop.permute.xlu0 %1547
    %1549 = vrot.lane.b32.xlu0 %v1513, 16
    %v1550 = vpop.permute.xlu0 %1549
    %1551 = vrot.lane.b32.xlu0 %v1515, 16
    %v1552 = vpop.permute.xlu0 %1551
    %v1553 = vsel %vm380, %v1538, %v1546
    %v1554 = vsel %vm380, %v1540, %v1548
    %v1555 = vsel %vm380, %v1542, %v1550
    %v1556 = vsel %vm380, %v1544, %v1552
    %v1557 = vsel %vm380, %v1546, %v1538
    %v1558 = vsel %vm380, %v1548, %v1540
    %v1559 = vsel %vm380, %v1550, %v1542
    %v1560 = vsel %vm380, %v1552, %v1544
    %s1561 = scalar_lea.vmem %s4, 30
    %v1562 = vld [vmem:[%s1561] sm:$0x3]
    %v1564 = vlaneseq
    %v1565 = vshrl.u32 %v1564, 7
    %v1566 = vsub.s32 0, %v1565
    %v1567 = vrot.slane %v1562, %v1566
    %v1568 = vlaneseq
    %v1569 = vshrl.u32 %v1568, 7
    %v1570 = vsub.s32 1, %v1569
    %v1571 = vrot.slane %v1562, %v1570
    %v1574 = vmul.f32 %v1557, %v1567
    %v1575 = vmul.f32 %v1553, %v1571
    %v1576 = vmul.f32 %v1558, %v1567
    %v1577 = vmul.f32 %v1554, %v1571
    %v1578 = vmul.f32 %v1559, %v1567
    %v1579 = vmul.f32 %v1555, %v1571
    %v1580 = vmul.f32 %v1560, %v1567
    %v1581 = vmul.f32 %v1556, %v1571
    %v1582 = vadd.f32 %v1529, %v1574
    %v1583 = vadd.f32 %v1530, %v1575
    %v1584 = vadd.f32 %v1531, %v1576
    %v1585 = vadd.f32 %v1532, %v1577
    %v1586 = vadd.f32 %v1533, %v1578
    %v1587 = vadd.f32 %v1534, %v1579
    %v1588 = vadd.f32 %v1535, %v1580
    %v1589 = vadd.f32 %v1536, %v1581
    %1590 = vrot.lane.b32.xlu0 %v1508, 112
    %v1591 = vpop.permute.xlu0 %1590
    %1592 = vrot.lane.b32.xlu0 %v1510, 112
    %v1593 = vpop.permute.xlu0 %1592
    %1594 = vrot.lane.b32.xlu0 %v1512, 112
    %v1595 = vpop.permute.xlu0 %1594
    %1596 = vrot.lane.b32.xlu0 %v1514, 112
    %v1597 = vpop.permute.xlu0 %1596
    %1598 = vrot.lane.b32.xlu0 %v1509, 112
    %v1599 = vpop.permute.xlu0 %1598
    %1600 = vrot.lane.b32.xlu0 %v1511, 112
    %v1601 = vpop.permute.xlu0 %1600
    %1602 = vrot.lane.b32.xlu0 %v1513, 112
    %v1603 = vpop.permute.xlu0 %1602
    %1604 = vrot.lane.b32.xlu0 %v1515, 112
    %v1605 = vpop.permute.xlu0 %1604
    %v1606 = vsel %vm433, %v1591, %v1599
    %v1607 = vsel %vm433, %v1593, %v1601
    %v1608 = vsel %vm433, %v1595, %v1603
    %v1609 = vsel %vm433, %v1597, %v1605
    %v1610 = vsel %vm433, %v1599, %v1591
    %v1611 = vsel %vm433, %v1601, %v1593
    %v1612 = vsel %vm433, %v1603, %v1595
    %v1613 = vsel %vm433, %v1605, %v1597
    %s1614 = scalar_lea.vmem %s4, 34
    %v1615 = vld [vmem:[%s1614] sm:$0x3]
    %v1617 = vlaneseq
    %v1618 = vshrl.u32 %v1617, 7
    %v1619 = vsub.s32 0, %v1618
    %v1620 = vrot.slane %v1615, %v1619
    %v1621 = vlaneseq
    %v1622 = vshrl.u32 %v1621, 7
    %v1623 = vsub.s32 1, %v1622
    %v1624 = vrot.slane %v1615, %v1623
    %v1627 = vmul.f32 %v1606, %v1620
    %v1628 = vmul.f32 %v1610, %v1624
    %v1629 = vmul.f32 %v1607, %v1620
    %v1630 = vmul.f32 %v1611, %v1624
    %v1631 = vmul.f32 %v1608, %v1620
    %v1632 = vmul.f32 %v1612, %v1624
    %v1633 = vmul.f32 %v1609, %v1620
    %v1634 = vmul.f32 %v1613, %v1624
    %v1635 = vadd.f32 %v1582, %v1627
    %v1636 = vadd.f32 %v1583, %v1628
    %v1637 = vadd.f32 %v1584, %v1629
    %v1638 = vadd.f32 %v1585, %v1630
    %v1639 = vadd.f32 %v1586, %v1631
    %v1640 = vadd.f32 %v1587, %v1632
    %v1641 = vadd.f32 %v1588, %v1633
    %v1642 = vadd.f32 %v1589, %v1634
    %v1643 = vld [vmem:[#allocation2] sm:$0xff]
    %v1644 = vld [vmem:[#allocation2 + $0x8] sm:$0xff]
    %v1645 = vld [vmem:[#allocation2 + $0x10] sm:$0xff]
    %v1646 = vld [vmem:[#allocation2 + $0x18] sm:$0xff]
    %v1647 = vld [vmem:[#allocation2 + $0x20] sm:$0xff]
    %v1648 = vld [vmem:[#allocation2 + $0x28] sm:$0xff]
    %v1649 = vld [vmem:[#allocation2 + $0x30] sm:$0xff]
    %v1650 = vld [vmem:[#allocation2 + $0x38] sm:$0xff]
    %v1651 = vadd.f32 %v1643, %v1635
    %v1652 = vadd.f32 %v1644, %v1636
    %v1653 = vadd.f32 %v1645, %v1637
    %v1654 = vadd.f32 %v1646, %v1638
    %v1655 = vadd.f32 %v1647, %v1639
    %v1656 = vadd.f32 %v1648, %v1640
    %v1657 = vadd.f32 %v1649, %v1641
    %v1658 = vadd.f32 %v1650, %v1642
    %1659 = vst [vmem:[#allocation2] sm:$0xff] %v1651
    %1660 = vst [vmem:[#allocation2 + $0x8] sm:$0xff] %v1652
    %1661 = vst [vmem:[#allocation2 + $0x10] sm:$0xff] %v1653
    %1662 = vst [vmem:[#allocation2 + $0x18] sm:$0xff] %v1654
    %1663 = vst [vmem:[#allocation2 + $0x20] sm:$0xff] %v1655
    %1664 = vst [vmem:[#allocation2 + $0x28] sm:$0xff] %v1656
    %1665 = vst [vmem:[#allocation2 + $0x30] sm:$0xff] %v1657
    %1666 = vst [vmem:[#allocation2 + $0x38] sm:$0xff] %v1658
    %v1667 = vld [vmem:[#allocation2] sm:$0xff]
    %v1668 = vld [vmem:[#allocation2 + $0x8] sm:$0xff]
    %v1669 = vld [vmem:[#allocation2 + $0x10] sm:$0xff]
    %v1670 = vld [vmem:[#allocation2 + $0x18] sm:$0xff]
    %v1671 = vld [vmem:[#allocation2 + $0x20] sm:$0xff]
    %v1672 = vld [vmem:[#allocation2 + $0x28] sm:$0xff]
    %v1673 = vld [vmem:[#allocation2 + $0x30] sm:$0xff]
    %v1674 = vld [vmem:[#allocation2 + $0x38] sm:$0xff]
    %s1675 = scalar_lea.vmem %s5, 2
    %v1676 = vld [vmem:[%s1675] sm:$0x3]
    %v1678 = vlaneseq
    %v1679 = vshrl.u32 %v1678, 7
    %v1680 = vsub.s32 0, %v1679
    %v1681 = vrot.slane %v1676, %v1680
    %v1682 = vlaneseq
    %v1683 = vshrl.u32 %v1682, 7
    %v1684 = vsub.s32 1, %v1683
    %v1685 = vrot.slane %v1676, %v1684
    %v1688 = vadd.f32 %v1667, %v1681
    %v1689 = vadd.f32 %v1668, %v1685
    %v1690 = vadd.f32 %v1669, %v1681
    %v1691 = vadd.f32 %v1670, %v1685
    %v1692 = vadd.f32 %v1671, %v1681
    %v1693 = vadd.f32 %v1672, %v1685
    %v1694 = vadd.f32 %v1673, %v1681
    %v1695 = vadd.f32 %v1674, %v1685
    %vm1696 = vcmp.gt.f32.partialorder %v1688, 0.0
    %vm1697 = vcmp.gt.f32.partialorder %v1689, 0.0
    %vm1698 = vcmp.gt.f32.partialorder %v1690, 0.0
    %vm1699 = vcmp.gt.f32.partialorder %v1691, 0.0
    %vm1700 = vcmp.gt.f32.partialorder %v1692, 0.0
    %vm1701 = vcmp.gt.f32.partialorder %v1693, 0.0
    %vm1702 = vcmp.gt.f32.partialorder %v1694, 0.0
    %vm1703 = vcmp.gt.f32.partialorder %v1695, 0.0
    %s1704 = scalar_lea.vmem %s6, 2
    %v1705 = vld [vmem:[%s1704] sm:$0x3]
    %v1707 = vlaneseq
    %v1708 = vshrl.u32 %v1707, 7
    %v1709 = vsub.s32 0, %v1708
    %v1710 = vrot.slane %v1705, %v1709
    %v1711 = vlaneseq
    %v1712 = vshrl.u32 %v1711, 7
    %v1713 = vsub.s32 1, %v1712
    %v1714 = vrot.slane %v1705, %v1713
    %v1717 = vmul.f32 %v1710, %v1688
    %v1718 = vmul.f32 %v1714, %v1689
    %v1719 = vmul.f32 %v1710, %v1690
    %v1720 = vmul.f32 %v1714, %v1691
    %v1721 = vmul.f32 %v1710, %v1692
    %v1722 = vmul.f32 %v1714, %v1693
    %v1723 = vmul.f32 %v1710, %v1694
    %v1724 = vmul.f32 %v1714, %v1695
    %v1725 = vsel %vm1696, %v1688, %v1717
    %v1726 = vsel %vm1697, %v1689, %v1718
    %v1727 = vsel %vm1698, %v1690, %v1719
    %v1728 = vsel %vm1699, %v1691, %v1720
    %v1729 = vsel %vm1700, %v1692, %v1721
    %v1730 = vsel %vm1701, %v1693, %v1722
    %v1731 = vsel %vm1702, %v1694, %v1723
    %v1732 = vsel %vm1703, %v1695, %v1724
    %s1733 = scalar_lea.vmem [#allocation8], 256
    %v1734 = vld [vmem:[%s1733] sm:$0xff]
    %v1735 = vld [vmem:[%s1733 + $0x8] sm:$0xff]
    %v1736 = vld [vmem:[%s1733 + $0x10] sm:$0xff]
    %v1737 = vld [vmem:[%s1733 + $0x18] sm:$0xff]
    %v1738 = vld [vmem:[%s1733 + $0x20] sm:$0xff]
    %v1739 = vld [vmem:[%s1733 + $0x28] sm:$0xff]
    %v1740 = vld [vmem:[%s1733 + $0x30] sm:$0xff]
    %v1741 = vld [vmem:[%s1733 + $0x38] sm:$0xff]
    %v1742 = vld [vmem:[%s1733 + $0x40] sm:$0xff]
    %v1743 = vld [vmem:[%s1733 + $0x48] sm:$0xff]
    %v1744 = vld [vmem:[%s1733 + $0x50] sm:$0xff]
    %v1745 = vld [vmem:[%s1733 + $0x58] sm:$0xff]
    %v1746 = vld [vmem:[%s1733 + $0x60] sm:$0xff]
    %v1747 = vld [vmem:[%s1733 + $0x68] sm:$0xff]
    %v1748 = vld [vmem:[%s1733 + $0x70] sm:$0xff]
    %v1749 = vld [vmem:[%s1733 + $0x78] sm:$0xff]
    %v1750 = vld [vmem:[%s1733 + $0x80] sm:$0xff]
    %v1751 = vld [vmem:[%s1733 + $0x88] sm:$0xff]
    %v1752 = vld [vmem:[%s1733 + $0x90] sm:$0xff]
    %v1753 = vld [vmem:[%s1733 + $0x98] sm:$0xff]
    %v1754 = vld [vmem:[%s1733 + $0xa0] sm:$0xff]
    %v1755 = vld [vmem:[%s1733 + $0xa8] sm:$0xff]
    %v1756 = vld [vmem:[%s1733 + $0xb0] sm:$0xff]
    %v1757 = vld [vmem:[%s1733 + $0xb8] sm:$0xff]
    %v1758 = vld [vmem:[%s1733 + $0xc0] sm:$0xff]
    %v1759 = vld [vmem:[%s1733 + $0xc8] sm:$0xff]
    %v1760 = vld [vmem:[%s1733 + $0xd0] sm:$0xff]
    %v1761 = vld [vmem:[%s1733 + $0xd8] sm:$0xff]
    %v1762 = vld [vmem:[%s1733 + $0xe0] sm:$0xff]
    %v1763 = vld [vmem:[%s1733 + $0xe8] sm:$0xff]
    %v1764 = vld [vmem:[%s1733 + $0xf0] sm:$0xff]
    %v1765 = vld [vmem:[%s1733 + $0xf8] sm:$0xff]
    %1766 = vmatprep.subr.mxu0 0.0
    %1767 = vmatpush1.msra.mxu0 %v1734
    %1768 = vmatprep.subr.mxu0 0.0
    %1769 = vmatpush1.msra.mxu0 %v1735
    %1770 = vmatprep.subr.mxu0 0.0
    %1771 = vmatpush1.msra.mxu0 %v1736
    %1772 = vmatprep.subr.mxu0 0.0
    %1773 = vmatpush1.msra.mxu0 %v1737
    %1774 = vmatprep.subr.mxu0 0.0
    %1775 = vmatpush1.msra.mxu0 %v1738
    %1776 = vmatprep.subr.mxu0 0.0
    %1777 = vmatpush1.msra.mxu0 %v1739
    %1778 = vmatprep.subr.mxu0 0.0
    %1779 = vmatpush1.msra.mxu0 %v1740
    %1780 = vmatprep.subr.mxu0 0.0
    %1781 = vmatpush1.msra.mxu0 %v1741
    %1782 = vmatprep.subr.mxu0 0.0
    %1783 = vmatpush1.msra.mxu0 %v1742
    %1784 = vmatprep.subr.mxu0 0.0
    %1785 = vmatpush1.msra.mxu0 %v1743
    %1786 = vmatprep.subr.mxu0 0.0
    %1787 = vmatpush1.msra.mxu0 %v1744
    %1788 = vmatprep.subr.mxu0 0.0
    %1789 = vmatpush1.msra.mxu0 %v1745
    %1790 = vmatprep.subr.mxu0 0.0
    %1791 = vmatpush1.msra.mxu0 %v1746
    %1792 = vmatprep.subr.mxu0 0.0
    %1793 = vmatpush1.msra.mxu0 %v1747
    %1794 = vmatprep.subr.mxu0 0.0
    %1795 = vmatpush1.msra.mxu0 %v1748
    %1796 = vmatprep.subr.mxu0 0.0
    %1797 = vmatpush1.msra.mxu0 %v1749
    %1798 = vmatprep.subr.mxu0 0.0
    %1799 = vmatpush1.msra.mxu0 %v1750
    %1800 = vmatprep.subr.mxu0 0.0
    %1801 = vmatpush1.msra.mxu0 %v1751
    %1802 = vmatprep.subr.mxu0 0.0
    %1803 = vmatpush1.msra.mxu0 %v1752
    %1804 = vmatprep.subr.mxu0 0.0
    %1805 = vmatpush1.msra.mxu0 %v1753
    %1806 = vmatprep.subr.mxu0 0.0
    %1807 = vmatpush1.msra.mxu0 %v1754
    %1808 = vmatprep.subr.mxu0 0.0
    %1809 = vmatpush1.msra.mxu0 %v1755
    %1810 = vmatprep.subr.mxu0 0.0
    %1811 = vmatpush1.msra.mxu0 %v1756
    %1812 = vmatprep.subr.mxu0 0.0
    %1813 = vmatpush1.msra.mxu0 %v1757
    %1814 = vmatprep.subr.mxu0 0.0
    %1815 = vmatpush1.msra.mxu0 %v1758
    %1816 = vmatprep.subr.mxu0 0.0
    %1817 = vmatpush1.msra.mxu0 %v1759
    %1818 = vmatprep.subr.mxu0 0.0
    %1819 = vmatpush1.msra.mxu0 %v1760
    %1820 = vmatprep.subr.mxu0 0.0
    %1821 = vmatpush1.msra.mxu0 %v1761
    %1822 = vmatprep.subr.mxu0 0.0
    %1823 = vmatpush1.msra.mxu0 %v1762
    %1824 = vmatprep.subr.mxu0 0.0
    %1825 = vmatpush1.msra.mxu0 %v1763
    %1826 = vmatprep.subr.mxu0 0.0
    %1827 = vmatpush1.msra.mxu0 %v1764
    %1828 = vmatprep.subr.mxu0 0.0
    %1829 = vmatpush1.msra.mxu0 %v1765
    %1830 = vmatprep.mubr.f32.mxu0 %v1726
    %1831 = vmatmul.mubr.f32.gmra.mrb[0].mxu0 %v1725
    %v1832 = vpop.f32.mrb[0].mxu0
    %v1833 = vadd.f32 0.0, %v1832
    %v1834 = vpop.f32.mrb[0].mxu0
    %1835 = vmatprep.mubr.f32.mxu0 %v1728
    %1836 = vmatmul.mubr.f32.gmra.mrb[0].mxu0 %v1727
    %v1837 = vpop.f32.mrb[0].mxu0
    %v1838 = vadd.f32 0.0, %v1837
    %v1839 = vpop.f32.mrb[0].mxu0
    %1840 = vmatprep.mubr.f32.mxu0 %v1730
    %1841 = vmatmul.mubr.f32.gmra.mrb[0].mxu0 %v1729
    %v1842 = vpop.f32.mrb[0].mxu0
    %v1843 = vadd.f32 0.0, %v1842
    %v1844 = vpop.f32.mrb[0].mxu0
    %1845 = vmatprep.mubr.f32.mxu0 %v1732
    %1846 = vmatmul.mubr.f32.gmra.mrb[0].mxu0 %v1731
    %v1847 = vpop.f32.mrb[0].mxu0
    %v1848 = vadd.f32 0.0, %v1847
    %v1849 = vpop.f32.mrb[0].mxu0
    %1850 = vdwg.mxu0
    %v1851 = vadd.f32 %v1006, %v1833
    %v1852 = vadd.f32 %v1007, %v1838
    %v1853 = vadd.f32 %v1008, %v1843
    %v1854 = vadd.f32 %v1009, %v1848
    %s1855 = scalar_lea.vmem %s8, 1
    %v1856 = vld [vmem:[%s1855] sm:$0x1]
    %v1858 = vlaneseq
    %v1859 = vshrl.u32 %v1858, 7
    %v1860 = vsub.s32 0, %v1859
    %v1861 = vrot.slane %v1856, %v1860
    %v1863 = vadd.f32 %v1851, %v1861
    %v1864 = vadd.f32 %v1852, %v1861
    %v1865 = vadd.f32 %v1853, %v1861
    %v1866 = vadd.f32 %v1854, %v1861
    %1867 = vst [vmem:[#allocation9] sm:$0xff] %v1863
    %1868 = vst [vmem:[#allocation9 + $0x8] sm:$0xff] %v1864
    %1869 = vst [vmem:[#allocation9 + $0x10] sm:$0xff] %v1865
    %1870 = vst [vmem:[#allocation9 + $0x18] sm:$0xff] %v1866
    // Predicated region
    $region50: #{tpu_custom_call.1} parent=1 // pred_check
      _
    $region51: #{tpu_custom_call.1} parent=1 // pred_check_branch
      %1872 = sbr.rel (0) target = $region53
    $region52: #{tpu_custom_call.1} parent=1 // pred_region
      %s1874 = ssub.s32 512, 512
      %1875 = vsyncadd [#allocation5], %s1874
      %s1876 = sshll.u32 [#allocation9], 4
      %s1877 = int_to_ptr.vmem [resolvable:$true] %s1876
      %1882 = dma.vmem_to_hbm [thread:$0]  %s1877, 512, %s9, [#allocation5], 128, 128, 8
    $region53: #{tpu_custom_call.1} parent=1 // pred_fallthru
      _
    // Predicated region
    $region54: #{tpu_custom_call.1} parent=1 // pred_check
      _
    $region55: #{tpu_custom_call.1} parent=1 // pred_check_branch
      %1884 = sbr.rel (0) target = $region57
    $region56: #{tpu_custom_call.1} parent=1 // pred_region
      %1885 = dma.done [#allocation5], 512
    $region57: #{tpu_custom_call.1} parent=1 // pred_fallthru
      _
    %1886 = vsyncpa [#allocation4], 1
    %1887 = vsyncpa [#allocation7], 1
    %1888 = vsyncpa [#allocation5], 1

</llo_original>
